<compile_context>
chip_gen: v7x
topology: tpu7x:2x2x1
jax: 0.10.0
libtpu: 0.0.40
codegen_flags: <defaults>
</compile_context>

<pallas_src>
import functools

import jax
import jax.numpy as jnp
from jax.experimental import pallas as pl
from jax.experimental.pallas import tpu as pltpu

LANE = 128
SMALL_N_MAX = 1024      # <= this many nodes -> fully-resident single-kernel path
LARGE_TILE = 512        # A_hat block size for the tiled path (multiple of 256)


def _round_up(v, m):
    return ((v + m - 1) // m) * m


def _pad2d(arr, rows, cols):
    pr, pc = rows - arr.shape[0], cols - arr.shape[1]
    if pr or pc:
        arr = jnp.pad(arr, ((0, pr), (0, pc)))
    return arr


def _vmem_limit_bytes():
    """~75% of this generation's VMEM (96 MiB on v5e/v6e, 48 MiB on v7x)."""
    try:
        cap = getattr(pltpu.get_tpu_info(), "vmem_capacity_bytes", None)
        if cap:
            return max(32 * 1024 * 1024, min(int(cap) * 3 // 4, 112 * 1024 * 1024))
    except Exception:
        pass
    return 48 * 1024 * 1024


# --------------------------------------------------------------------------
# Small-graph path: both layers in ONE kernel, everything VMEM-resident.
# --------------------------------------------------------------------------
def _gcn_small_kernel(a_ref, x_ref, w1_ref, b1_ref, w2_ref, b2_ref, o_ref, h_ref,
                      *, row_chunk):
    n_chunks = a_ref.shape[0] // row_chunk

    # Layer 1: H = relu((A @ X) @ W1 + b1); row-chunked so f32 temporaries stay small.
    @pl.loop(0, n_chunks)
    def _(c):
        r = pl.multiple_of(c * row_chunk, row_chunk)
        ax = jnp.dot(a_ref[pl.ds(r, row_chunk), :], x_ref[...],
                     preferred_element_type=jnp.float32)
        h = jnp.dot(ax.astype(jnp.bfloat16), w1_ref[...],
                    preferred_element_type=jnp.float32) + b1_ref[...]
        h_ref[pl.ds(r, row_chunk), :] = jnp.maximum(h, 0.0).astype(h_ref.dtype)

    # Dropout(p=0.5) in eval mode == identity.
    # Layer 2: out = (A @ H) @ W2 + b2.
    @pl.loop(0, n_chunks)
    def _(c):
        r = pl.multiple_of(c * row_chunk, row_chunk)
        ah = jnp.dot(a_ref[pl.ds(r, row_chunk), :], h_ref[...],
                     preferred_element_type=jnp.float32)
        o_ref[pl.ds(r, row_chunk), :] = (
            jnp.dot(ah.astype(jnp.bfloat16), w2_ref[...],
                    preferred_element_type=jnp.float32) + b2_ref[...]
        ).astype(o_ref.dtype)


def _gcn_forward_small(a_p, x_p, w1_p, b1_p, w2_p, b2_p, *, vmem_limit):
    n_p = a_p.shape[0]
    hid_p = w1_p.shape[1]
    cout_p = w2_p.shape[1]
    row_chunk = min(n_p, 256)
    kernel = functools.partial(_gcn_small_kernel, row_chunk=row_chunk)
    vmem = pltpu.MemorySpace.VMEM
    return pl.pallas_call(
        kernel,
        out_shape=jax.ShapeDtypeStruct((n_p, cout_p), jnp.float32),
        in_specs=[pl.BlockSpec(memory_space=vmem)] * 6,
        out_specs=pl.BlockSpec(memory_space=vmem),
        scratch_shapes=[pltpu.VMEM((n_p, hid_p), jnp.bfloat16)],
        compiler_params=pltpu.CompilerParams(vmem_limit_bytes=vmem_limit),
    )(a_p, x_p, w1_p, b1_p, w2_p, b2_p)


# --------------------------------------------------------------------------
# Large-graph path: fused tiled propagation  Y = (A_hat @ M) @ W + b (+ReLU).
# --------------------------------------------------------------------------
def _fused_prop_kernel(a_ref, m_ref, w_ref, b_ref, o_ref, *scratch,
                       tile_k, apply_relu, m_resident):
    # When the output is f32 and matches the accumulator shape we accumulate
    # directly into o_ref (resident across k) and skip the scratch buffer.
    acc_ref = scratch[0] if scratch else o_ref
    k = pl.program_id(1)

    @pl.when(k == 0)
    def _():
        acc_ref[...] = jnp.zeros_like(acc_ref)

    if m_resident:
        off = pl.multiple_of(k * tile_k, tile_k)
        m_blk = m_ref[pl.ds(off, tile_k), :]
    else:
        m_blk = m_ref[...]
    acc_ref[...] += jnp.dot(a_ref[...], m_blk, preferred_element_type=jnp.float32)

    @pl.when(k == pl.num_programs(1) - 1)
    def _():
        res = jnp.dot(acc_ref[...].astype(jnp.bfloat16), w_ref[...],
                      preferred_element_type=jnp.float32) + b_ref[...]
        if apply_relu:
            res = jnp.maximum(res, 0.0)
        o_ref[...] = res.astype(o_ref.dtype)


def _propagate_fused(a_p, m, w, b, *, apply_relu, out_dtype, tile_m, tile_k,
                     vmem_limit):
    n_p = a_p.shape[0]
    f_in = m.shape[1]
    f_out = w.shape[1]
    grid = (n_p // tile_m, n_p // tile_k)   # (rows "parallel", reduction "arbitrary")

    # Keep the feature matrix fully VMEM-resident when it comfortably fits
    # (removes the per-row-block re-stream that otherwise doubles HBM traffic).
    m_bytes = 2 * n_p * f_in * m.dtype.itemsize    # x2: possible double buffering
    m_resident = m_bytes <= vmem_limit // 4
    if m_resident:
        m_spec = pl.BlockSpec((n_p, f_in), lambda i, k: (0, 0))
    else:
        m_spec = pl.BlockSpec((tile_k, f_in), lambda i, k: (k, 0))

    accumulate_in_out = (out_dtype == jnp.float32) and (f_in == f_out)
    scratch_shapes = [] if accumulate_in_out else [pltpu.VMEM((tile_m, f_in), jnp.float32)]

    kernel = functools.partial(_fused_prop_kernel, tile_k=tile_k,
                               apply_relu=apply_relu, m_resident=m_resident)
    return pl.pallas_call(
        kernel,
        out_shape=jax.ShapeDtypeStruct((n_p, f_out), out_dtype),
        grid_spec=pltpu.PrefetchScalarGridSpec(
            num_scalar_prefetch=0,
            grid=grid,
            in_specs=[
                pl.BlockSpec((tile_m, tile_k), lambda i, k: (i, k)),   # A_hat stream
                m_spec,                                                # features
                pl.BlockSpec((f_in, f_out), lambda i, k: (0, 0)),      # weight (resident)
                pl.BlockSpec((1, f_out), lambda i, k: (0, 0)),         # bias (resident)
            ],
            out_specs=pl.BlockSpec((tile_m, f_out), lambda i, k: (i, 0)),
            scratch_shapes=scratch_shapes,
        ),
        compiler_params=pltpu.CompilerParams(
            dimension_semantics=("parallel", "arbitrary"),
            vmem_limit_bytes=vmem_limit,
        ),
    )(a_p, m, w, b)


# ------------------------------ full forward --------------------------------
def gcn_forward(a_hat, x, w1, b1, w2, b2):
    n, cin = x.shape
    hid = w1.shape[1]
    cout = w2.shape[1]
    vmem_limit = _vmem_limit_bytes()

    small = n <= SMALL_N_MAX
    n_p = _round_up(n, 256 if small else LARGE_TILE)
    cin_p = _round_up(cin, LANE)
    hid_p = _round_up(hid, LANE)
    cout_p = _round_up(cout, LANE)

    # bf16 MXU operands, lane-dense zero padding (padded A rows/cols are inert).
    # NOTE: for repeated forwards over the same graph, cache these padded/cast
    # arrays (especially a_p) outside the per-call path.
    a_p = _pad2d(a_hat, n_p, n_p).astype(jnp.bfloat16)
    x_p = _pad2d(x, n_p, cin_p).astype(jnp.bfloat16)
    w1_p = _pad2d(w1, cin_p, hid_p).astype(jnp.bfloat16)
    w2_p = _pad2d(w2, hid_p, cout_p).astype(jnp.bfloat16)
    b1_p = _pad2d(jnp.reshape(b1, (1, -1)), 1, hid_p).astype(jnp.float32)
    b2_p = _pad2d(jnp.reshape(b2, (1, -1)), 1, cout_p).astype(jnp.float32)

    if small:
        out = _gcn_forward_small(a_p, x_p, w1_p, b1_p, w2_p, b2_p,
                                 vmem_limit=vmem_limit)
    else:
        tile = LARGE_TILE
        h = _propagate_fused(a_p, x_p, w1_p, b1_p, apply_relu=True,
                             out_dtype=jnp.bfloat16, tile_m=tile, tile_k=tile,
                             vmem_limit=vmem_limit)
        # Dropout(p=0.5) in eval mode == identity.
        out = _propagate_fused(a_p, h, w2_p, b2_p, apply_relu=False,
                               out_dtype=jnp.float32, tile_m=tile, tile_k=tile,
                               vmem_limit=vmem_limit)
    return out[:n, :cout]


# ------------------------- Graph preprocessing (glue) -----------------------
def build_normalized_adjacency(edge_index, edge_weight, num_nodes):
    """Dense A_hat = D^-1/2 (A + I) D^-1/2, matching PyG gcn_norm defaults."""
    src, dst = edge_index[0], edge_index[1]
    if edge_weight is None:
        edge_weight = jnp.ones(src.shape[0], dtype=jnp.float32)
    loop_idx = jnp.arange(num_nodes, dtype=src.dtype)
    src = jnp.concatenate([src, loop_idx])
    dst = jnp.concatenate([dst, loop_idx])
    w = jnp.concatenate([edge_weight, jnp.ones(num_nodes, dtype=jnp.float32)])
    a = jnp.zeros((num_nodes, num_nodes), dtype=jnp.float32).at[dst, src].add(w)
    deg = a.sum(axis=1)
    dinv = jnp.where(deg > 0, jax.lax.rsqrt(deg), 0.0)
    return dinv[:, None] * a * dinv[None, :]


def glorot(key, shape):
    fan_in, fan_out = shape
    limit = jnp.sqrt(6.0 / (fan_in + fan_out))
    return jax.random.uniform(key, shape, jnp.float32, -limit, limit)


def gcn_reference(a_hat, x, w1, b1, w2, b2):
    """Pure-JAX reference mirroring the kernel's fused bf16/f32 math."""
    def q(v):
        return v.astype(jnp.bfloat16).astype(jnp.float32)
    hi = jax.lax.Precision.HIGHEST
    ax = jnp.dot(q(a_hat), q(x), precision=hi)
    h = q(jnp.maximum(jnp.dot(q(ax), q(w1), precision=hi) + b1.reshape(1, -1), 0.0))
    ah = jnp.dot(q(a_hat), h, precision=hi)
    return jnp.dot(q(ah), q(w2), precision=hi) + b2.reshape(1, -1)


# --------------------------------- main -------------------------------------
if __name__ == "__main__":
    def run_case(key, num_nodes, num_edges, cin, hid, cout):
        k_x, k_e, k_w, k_w1, k_w2, k_b1, k_b2 = jax.random.split(key, 7)
        x = jax.random.normal(k_x, (num_nodes, cin), jnp.float32)
        edge_index = jax.random.randint(k_e, (2, num_edges), 0, num_nodes, jnp.int32)
        edge_weight = jax.random.uniform(k_w, (num_edges,), jnp.float32, 0.5, 1.5)
        w1 = glorot(k_w1, (cin, hid))
        b1 = 0.1 * jax.random.normal(k_b1, (hid,), jnp.float32)
        w2 = glorot(k_w2, (hid, cout))
        b2 = 0.1 * jax.random.normal(k_b2, (cout,), jnp.float32)

        a_hat = build_normalized_adjacency(edge_index, edge_weight, num_nodes)
        out = jax.block_until_ready(gcn_forward(a_hat, x, w1, b1, w2, b2))
        ref = gcn_reference(a_hat, x, w1, b1, w2, b2)

        assert out.shape == (num_nodes, cout)
        assert jnp.allclose(out, ref, atol=1e-2, rtol=1e-2), \
            float(jnp.max(jnp.abs(out - ref)))

    key = jax.random.PRNGKey(0)
    k_small, k_large = jax.random.split(key)
    # Small-graph fully-resident single-kernel path (matches the module's test size).
    run_case(k_small, num_nodes=256, num_edges=1024, cin=8, hid=32, cout=4)
    # Large-graph tiled fused-propagation path (512x512 A tiles, resident features).
    run_case(k_large, num_nodes=1400, num_edges=6000, cin=8, hid=32, cout=4)

    print("KERNEL_OK")
</pallas_src>

<mosaic_0001>
module attributes {stable_mosaic.version = 11 : i64} {
  func.func @_gcn_small_kernel(%arg0: memref<256x256xbf16, #tpu.memory_space<vmem>>, %arg1: memref<256x128xbf16, #tpu.memory_space<vmem>>, %arg2: memref<128x128xbf16, #tpu.memory_space<vmem>>, %arg3: memref<1x128xf32, #tpu.memory_space<vmem>>, %arg4: memref<128x128xbf16, #tpu.memory_space<vmem>>, %arg5: memref<1x128xf32, #tpu.memory_space<vmem>>, %arg6: memref<256x128xf32, #tpu.memory_space<vmem>>, %arg7: memref<256x128xbf16, #tpu.memory_space<vmem>>) attributes {dimension_semantics = [], scalar_prefetch = 0 : i64, scratch_operands = 1 : i64, tpu.core_type = #tpu.core_type<tc>} {
    %c0_i32 = arith.constant 0 : i32
    %c1_i32 = arith.constant 1 : i32
    %0 = arith.muli %c0_i32, %c1_i32 : i32
    %c0_i32_0 = arith.constant 0 : i32
    %1 = arith.addi %c0_i32_0, %0 : i32
    %c256_i32 = arith.constant 256 : i32
    %2 = arith.muli %1, %c256_i32 : i32
    %3 = tpu.assume_multiple %2, 256 : i32
    %4 = arith.index_cast %3 : i32 to index
    %c0 = arith.constant 0 : index
    %5 = vector.load %arg0[%4, %c0] : memref<256x256xbf16, #tpu.memory_space<vmem>>, vector<256x256xbf16>
    %c0_1 = arith.constant 0 : index
    %c0_2 = arith.constant 0 : index
    %6 = vector.load %arg1[%c0_1, %c0_2] : memref<256x128xbf16, #tpu.memory_space<vmem>>, vector<256x128xbf16>
    %cst = arith.constant dense<0.000000e+00> : vector<256x128xf32>
    %7 = tpu.matmul %5, %6, %cst {dimension_numbers = #tpu.dot_dimension_numbers<[1], [0], [0], [1], [0, 0, 1, 1], [], []>} : vector<256x256xbf16>, vector<256x128xbf16>, vector<256x128xf32> -> vector<256x128xf32>
    %8 = arith.truncf %7 : vector<256x128xf32> to vector<256x128xbf16>
    %c0_3 = arith.constant 0 : index
    %c0_4 = arith.constant 0 : index
    %9 = vector.load %arg2[%c0_3, %c0_4] : memref<128x128xbf16, #tpu.memory_space<vmem>>, vector<128x128xbf16>
    %cst_5 = arith.constant dense<0.000000e+00> : vector<256x128xf32>
    %10 = tpu.matmul %8, %9, %cst_5 {dimension_numbers = #tpu.dot_dimension_numbers<[1], [0], [0], [1], [0, 0, 1, 1], [], []>} : vector<256x128xbf16>, vector<128x128xbf16>, vector<256x128xf32> -> vector<256x128xf32>
    %c0_6 = arith.constant 0 : index
    %c0_7 = arith.constant 0 : index
    %11 = vector.load %arg3[%c0_6, %c0_7] : memref<1x128xf32, #tpu.memory_space<vmem>>, vector<1x128xf32>
    %12 = vector.broadcast %11 : vector<1x128xf32> to vector<256x128xf32>
    %13 = arith.addf %10, %12 : vector<256x128xf32>
    %cst_8 = arith.constant 0.000000e+00 : f32
    %14 = vector.broadcast %cst_8 : f32 to vector<256x128xf32>
    %15 = arith.maximumf %13, %14 : vector<256x128xf32>
    %16 = arith.truncf %15 : vector<256x128xf32> to vector<256x128xbf16>
    %17 = arith.index_cast %3 : i32 to index
    %c0_9 = arith.constant 0 : index
    %18 = vector.load %arg7[%17, %c0_9] : memref<256x128xbf16, #tpu.memory_space<vmem>>, vector<256x128xbf16>
    tpu.vector_store %arg7[%17, %c0_9], %16 {strides = array<i32>} : memref<256x128xbf16, #tpu.memory_space<vmem>>, vector<256x128xbf16>,
    %c1_i32_10 = arith.constant 1 : i32
    %c0_i32_11 = arith.constant 0 : i32
    %c1_i32_12 = arith.constant 1 : i32
    %19 = arith.muli %c0_i32_11, %c1_i32_12 : i32
    %c0_i32_13 = arith.constant 0 : i32
    %20 = arith.addi %c0_i32_13, %19 : i32
    %c256_i32_14 = arith.constant 256 : i32
    %21 = arith.muli %20, %c256_i32_14 : i32
    %22 = tpu.assume_multiple %21, 256 : i32
    %23 = arith.index_cast %22 : i32 to index
    %c0_15 = arith.constant 0 : index
    %24 = vector.load %arg0[%23, %c0_15] : memref<256x256xbf16, #tpu.memory_space<vmem>>, vector<256x256xbf16>
    %c0_16 = arith.constant 0 : index
    %c0_17 = arith.constant 0 : index
    %25 = vector.load %arg7[%c0_16, %c0_17] : memref<256x128xbf16, #tpu.memory_space<vmem>>, vector<256x128xbf16>
    %cst_18 = arith.constant dense<0.000000e+00> : vector<256x128xf32>
    %26 = tpu.matmul %24, %25, %cst_18 {dimension_numbers = #tpu.dot_dimension_numbers<[1], [0], [0], [1], [0, 0, 1, 1], [], []>} : vector<256x256xbf16>, vector<256x128xbf16>, vector<256x128xf32> -> vector<256x128xf32>
    %27 = arith.truncf %26 : vector<256x128xf32> to vector<256x128xbf16>
    %c0_19 = arith.constant 0 : index
    %c0_20 = arith.constant 0 : index
    %28 = vector.load %arg4[%c0_19, %c0_20] : memref<128x128xbf16, #tpu.memory_space<vmem>>, vector<128x128xbf16>
    %cst_21 = arith.constant dense<0.000000e+00> : vector<256x128xf32>
    %29 = tpu.matmul %27, %28, %cst_21 {dimension_numbers = #tpu.dot_dimension_numbers<[1], [0], [0], [1], [0, 0, 1, 1], [], []>} : vector<256x128xbf16>, vector<128x128xbf16>, vector<256x128xf32> -> vector<256x128xf32>
    %c0_22 = arith.constant 0 : index
    %c0_23 = arith.constant 0 : index
    %30 = vector.load %arg5[%c0_22, %c0_23] : memref<1x128xf32, #tpu.memory_space<vmem>>, vector<1x128xf32>
    %31 = vector.broadcast %30 : vector<1x128xf32> to vector<256x128xf32>
    %32 = arith.addf %29, %31 : vector<256x128xf32>
    %33 = arith.index_cast %22 : i32 to index
    %c0_24 = arith.constant 0 : index
    %34 = vector.load %arg6[%33, %c0_24] : memref<256x128xf32, #tpu.memory_space<vmem>>, vector<256x128xf32>
    tpu.vector_store %arg6[%33, %c0_24], %32 {strides = array<i32>} : memref<256x128xf32, #tpu.memory_space<vmem>>, vector<256x128xf32>,
    %c1_i32_25 = arith.constant 1 : i32
    return
  }
}

</mosaic_0001>

<llo_original>
// kernel: tpu_custom_call.1
$region0: #{tpu_custom_call.1}
  #allocation0 [shape = 'u32[]', space=smem, size = 0x4, offset = 0x4, fixed_abs, tag = 'smem constant byte address 0x4 - core index']
  #allocation1 [shape = 'u32[144,128]{1,0:T(1,128)}', space=vmem, size = 0x12000, scoped, tag = 'internal scratch']
  #allocation2 [shape = 'bf16[256,128]{1,0:T(16,128)(2,1)}', space=vmem, size = 0x10000, scoped, tag = 'scratch operand']
  %s0 = inlined_call_operand.hbm [shape: bf16[256,256], index: 0, kind: input, shape index: {}]
  %s1 = inlined_call_operand.hbm [shape: bf16[256,128], index: 1, kind: input, shape index: {}]
  %s2 = inlined_call_operand.hbm [shape: bf16[128,128], index: 2, kind: input, shape index: {}]
  %s3 = inlined_call_operand.vmem [shape: f32[1,128], index: 3, kind: input, shape index: {}]
  %s4 = inlined_call_operand.hbm [shape: bf16[128,128], index: 4, kind: input, shape index: {}]
  %s5 = inlined_call_operand.vmem [shape: f32[1,128], index: 5, kind: input, shape index: {}]
  %s6 = inlined_call_operand.hbm [shape: f32[256,128], index: 6, kind: output, shape index: {}]
  %s7 = sld [smem:[#allocation0]]
  $region50: #{tpu_custom_call.1} parent=0
    _
  %s9 = ssub.s32 1, %s7
  %s10 = scalar_select 0, %s9, %s7
  $region1: #{tpu_custom_call.1} parent=0
    #allocation3 [shape = 'u8[131072]{0}', space=vmem, size = 0x20000, scoped, tag = 'input window, operand 0, single buffered']
    #allocation4 [shape = 's32[1]{0}', space=sflag, size = 0x4, scoped, tag = 'scoped memory for tpu_custom_call.1']
    #allocation5 [shape = 's32[1]{0}', space=sflag, size = 0x4, scoped, tag = 'scoped memory for tpu_custom_call.1']
    #allocation6 [shape = 'u8[65536]{0}', space=vmem, size = 0x10000, scoped, tag = 'input window, operand 1, single buffered']
    #allocation7 [shape = 's32[1]{0}', space=sflag, size = 0x4, scoped, tag = 'scoped memory for tpu_custom_call.1']
    #allocation8 [shape = 'u8[32768]{0}', space=vmem, size = 0x8000, scoped, tag = 'input window, operand 2, single buffered']
    #allocation9 [shape = 'u8[32768]{0}', space=vmem, size = 0x8000, scoped, tag = 'input window, operand 4, single buffered']
    #allocation10 [shape = 's32[1]{0}', space=sflag, size = 0x4, scoped, tag = 'scoped memory for tpu_custom_call.1']
    #allocation11 [shape = 'u8[131072]{0}', space=vmem, size = 0x20000, scoped, tag = 'output window, operand 0, single buffered']
    %11 = vsyncpa [#allocation4], 0
    %12 = vsyncpa [#allocation7], 0
    %13 = vsyncpa [#allocation10], 0
    %14 = vsyncpa [#allocation5], 0
    // Predicated region
    $region2: #{tpu_custom_call.1} parent=1 // pred_check
      _
    $region3: #{tpu_custom_call.1} parent=1 // pred_check_branch
      %16 = sbr.rel (0) target = $region5
    $region4: #{tpu_custom_call.1} parent=1 // pred_region
      %s18 = ssub.s32 4096, 4096
      %19 = vsyncadd [#allocation4], %s18
      %s20 = sshll.u32 [#allocation3], 4
      %s21 = int_to_ptr.vmem [resolvable:$true] %s20
      %26 = dma.hbm_to_vmem [thread:$0]  %s0, 4096, %s21, [#allocation4], 128, 128, 8
    $region5: #{tpu_custom_call.1} parent=1 // pred_fallthru
      _
    // Predicated region
    $region6: #{tpu_custom_call.1} parent=1 // pred_check
      _
    $region7: #{tpu_custom_call.1} parent=1 // pred_check_branch
      %28 = sbr.rel (0) target = $region9
    $region8: #{tpu_custom_call.1} parent=1 // pred_region
      %s30 = ssub.s32 2048, 2048
      %31 = vsyncadd [#allocation7], %s30
      %s32 = sshll.u32 [#allocation6], 4
      %s33 = int_to_ptr.vmem [resolvable:$true] %s32
      %38 = dma.hbm_to_vmem [thread:$0]  %s1, 2048, %s33, [#allocation7], 64, 64, 4
    $region9: #{tpu_custom_call.1} parent=1 // pred_fallthru
      _
    // Predicated region
    $region10: #{tpu_custom_call.1} parent=1 // pred_check
      _
    $region11: #{tpu_custom_call.1} parent=1 // pred_check_branch
      %40 = sbr.rel (0) target = $region13
    $region12: #{tpu_custom_call.1} parent=1 // pred_region
      %s42 = ssub.s32 1024, 1024
      %43 = vsyncadd [#allocation7], %s42
      %s44 = sshll.u32 [#allocation8], 4
      %s45 = int_to_ptr.vmem [resolvable:$true] %s44
      %50 = dma.hbm_to_vmem [thread:$0]  %s2, 1024, %s45, [#allocation7], 64, 64, 4
    $region13: #{tpu_custom_call.1} parent=1 // pred_fallthru
      _
    // Predicated region
    $region14: #{tpu_custom_call.1} parent=1 // pred_check
      _
    $region15: #{tpu_custom_call.1} parent=1 // pred_check_branch
      %52 = sbr.rel (0) target = $region17
    $region16: #{tpu_custom_call.1} parent=1 // pred_region
      _
    $region17: #{tpu_custom_call.1} parent=1 // pred_fallthru
      _
    // Predicated region
    $region18: #{tpu_custom_call.1} parent=1 // pred_check
      _
    $region19: #{tpu_custom_call.1} parent=1 // pred_check_branch
      %54 = sbr.rel (0) target = $region21
    $region20: #{tpu_custom_call.1} parent=1 // pred_region
      %s56 = ssub.s32 1024, 1024
      %57 = vsyncadd [#allocation10], %s56
      %s58 = sshll.u32 [#allocation9], 4
      %s59 = int_to_ptr.vmem [resolvable:$true] %s58
      %64 = dma.hbm_to_vmem [thread:$0]  %s4, 1024, %s59, [#allocation10], 64, 64, 4
    $region21: #{tpu_custom_call.1} parent=1 // pred_fallthru
      _
    // Predicated region
    $region22: #{tpu_custom_call.1} parent=1 // pred_check
      _
    $region23: #{tpu_custom_call.1} parent=1 // pred_check_branch
      %66 = sbr.rel (0) target = $region25
    $region24: #{tpu_custom_call.1} parent=1 // pred_region
      _
    $region25: #{tpu_custom_call.1} parent=1 // pred_fallthru
      _
    // Predicated region
    $region26: #{tpu_custom_call.1} parent=1 // pred_check
      _
    $region27: #{tpu_custom_call.1} parent=1 // pred_check_branch
      %68 = sbr.rel (0) target = $region29
    $region28: #{tpu_custom_call.1} parent=1 // pred_region
      %69 = dma.done [#allocation4], 4096
    $region29: #{tpu_custom_call.1} parent=1 // pred_fallthru
      _
    // Predicated region
    $region30: #{tpu_custom_call.1} parent=1 // pred_check
      _
    $region31: #{tpu_custom_call.1} parent=1 // pred_check_branch
      %71 = sbr.rel (0) target = $region33
    $region32: #{tpu_custom_call.1} parent=1 // pred_region
      %72 = dma.done [#allocation7], 2048
    $region33: #{tpu_custom_call.1} parent=1 // pred_fallthru
      _
    // Predicated region
    $region34: #{tpu_custom_call.1} parent=1 // pred_check
      _
    $region35: #{tpu_custom_call.1} parent=1 // pred_check_branch
      %74 = sbr.rel (0) target = $region37
    $region36: #{tpu_custom_call.1} parent=1 // pred_region
      %75 = dma.done [#allocation7], 1024
    $region37: #{tpu_custom_call.1} parent=1 // pred_fallthru
      _
    // Predicated region
    $region38: #{tpu_custom_call.1} parent=1 // pred_check
      _
    $region39: #{tpu_custom_call.1} parent=1 // pred_check_branch
      %77 = sbr.rel (0) target = $region41
    $region40: #{tpu_custom_call.1} parent=1 // pred_region
      %78 = dma.done [#allocation10], 1024
    $region41: #{tpu_custom_call.1} parent=1 // pred_fallthru
      _
    %s80 = smul.u32 0, 2
    %s81 = smul.addr %s80, 4
    %s82 = scalar_lea.vmem [#allocation3], %s81
    %v83 = vld [vmem:[%s82] sm:$0xff]
    %v84 = vld [vmem:[%s82 + $0x8] sm:$0xff]
    %v85 = vld [vmem:[%s82 + $0x10] sm:$0xff]
    %v86 = vld [vmem:[%s82 + $0x18] sm:$0xff]
    %v87 = vld [vmem:[%s82 + $0x20] sm:$0xff]
    %v88 = vld [vmem:[%s82 + $0x28] sm:$0xff]
    %v89 = vld [vmem:[%s82 + $0x30] sm:$0xff]
    %v90 = vld [vmem:[%s82 + $0x38] sm:$0xff]
    %v91 = vld [vmem:[%s82 + $0x40] sm:$0xff]
    %v92 = vld [vmem:[%s82 + $0x48] sm:$0xff]
    %v93 = vld [vmem:[%s82 + $0x50] sm:$0xff]
    %v94 = vld [vmem:[%s82 + $0x58] sm:$0xff]
    %v95 = vld [vmem:[%s82 + $0x60] sm:$0xff]
    %v96 = vld [vmem:[%s82 + $0x68] sm:$0xff]
    %v97 = vld [vmem:[%s82 + $0x70] sm:$0xff]
    %v98 = vld [vmem:[%s82 + $0x78] sm:$0xff]
    %v99 = vld [vmem:[%s82 + $0x80] sm:$0xff]
    %v100 = vld [vmem:[%s82 + $0x88] sm:$0xff]
    %v101 = vld [vmem:[%s82 + $0x90] sm:$0xff]
    %v102 = vld [vmem:[%s82 + $0x98] sm:$0xff]
    %v103 = vld [vmem:[%s82 + $0xa0] sm:$0xff]
    %v104 = vld [vmem:[%s82 + $0xa8] sm:$0xff]
    %v105 = vld [vmem:[%s82 + $0xb0] sm:$0xff]
    %v106 = vld [vmem:[%s82 + $0xb8] sm:$0xff]
    %v107 = vld [vmem:[%s82 + $0xc0] sm:$0xff]
    %v108 = vld [vmem:[%s82 + $0xc8] sm:$0xff]
    %v109 = vld [vmem:[%s82 + $0xd0] sm:$0xff]
    %v110 = vld [vmem:[%s82 + $0xd8] sm:$0xff]
    %v111 = vld [vmem:[%s82 + $0xe0] sm:$0xff]
    %v112 = vld [vmem:[%s82 + $0xe8] sm:$0xff]
    %v113 = vld [vmem:[%s82 + $0xf0] sm:$0xff]
    %v114 = vld [vmem:[%s82 + $0xf8] sm:$0xff]
    %v115 = vld [vmem:[#allocation6] sm:$0xf]
    %v116 = vld [vmem:[#allocation6 + $0x4] sm:$0xf]
    %v117 = vld [vmem:[#allocation6 + $0x8] sm:$0xf]
    %v118 = vld [vmem:[#allocation6 + $0xc] sm:$0xf]
    %v119 = vld [vmem:[#allocation6 + $0x10] sm:$0xf]
    %v120 = vld [vmem:[#allocation6 + $0x14] sm:$0xf]
    %v121 = vld [vmem:[#allocation6 + $0x18] sm:$0xf]
    %v122 = vld [vmem:[#allocation6 + $0x1c] sm:$0xf]
    %v123 = vld [vmem:[#allocation6 + $0x20] sm:$0xf]
    %v124 = vld [vmem:[#allocation6 + $0x24] sm:$0xf]
    %v125 = vld [vmem:[#allocation6 + $0x28] sm:$0xf]
    %v126 = vld [vmem:[#allocation6 + $0x2c] sm:$0xf]
    %v127 = vld [vmem:[#allocation6 + $0x30] sm:$0xf]
    %v128 = vld [vmem:[#allocation6 + $0x34] sm:$0xf]
    %v129 = vld [vmem:[#allocation6 + $0x38] sm:$0xf]
    %v130 = vld [vmem:[#allocation6 + $0x3c] sm:$0xf]
    %v131 = vld [vmem:[#allocation6 + $0x40] sm:$0xf]
    %v132 = vld [vmem:[#allocation6 + $0x44] sm:$0xf]
    %v133 = vld [vmem:[#allocation6 + $0x48] sm:$0xf]
    %v134 = vld [vmem:[#allocation6 + $0x4c] sm:$0xf]
    %v135 = vld [vmem:[#allocation6 + $0x50] sm:$0xf]
    %v136 = vld [vmem:[#allocation6 + $0x54] sm:$0xf]
    %v137 = vld [vmem:[#allocation6 + $0x58] sm:$0xf]
    %v138 = vld [vmem:[#allocation6 + $0x5c] sm:$0xf]
    %v139 = vld [vmem:[#allocation6 + $0x60] sm:$0xf]
    %v140 = vld [vmem:[#allocation6 + $0x64] sm:$0xf]
    %v141 = vld [vmem:[#allocation6 + $0x68] sm:$0xf]
    %v142 = vld [vmem:[#allocation6 + $0x6c] sm:$0xf]
    %v143 = vld [vmem:[#allocation6 + $0x70] sm:$0xf]
    %v144 = vld [vmem:[#allocation6 + $0x74] sm:$0xf]
    %v145 = vld [vmem:[#allocation6 + $0x78] sm:$0xf]
    %v146 = vld [vmem:[#allocation6 + $0x7c] sm:$0xf]
    %v179 = vunpack.c.l.b16 %v83
    %v180 = vunpack.c.h.b16 %v83
    %v181 = vunpack.c.l.b16 %v84
    %v182 = vunpack.c.h.b16 %v84
    %v183 = vunpack.c.l.b16 %v85
    %v184 = vunpack.c.h.b16 %v85
    %v185 = vunpack.c.l.b16 %v86
    %v186 = vunpack.c.h.b16 %v86
    %v187 = vunpack.c.l.b16 %v87
    %v188 = vunpack.c.h.b16 %v87
    %v189 = vunpack.c.l.b16 %v88
    %v190 = vunpack.c.h.b16 %v88
    %v191 = vunpack.c.l.b16 %v89
    %v192 = vunpack.c.h.b16 %v89
    %v193 = vunpack.c.l.b16 %v90
    %v194 = vunpack.c.h.b16 %v90
    %v195 = vunpack.c.l.b16 %v91
    %v196 = vunpack.c.h.b16 %v91
    %v197 = vunpack.c.l.b16 %v92
    %v198 = vunpack.c.h.b16 %v92
    %v199 = vunpack.c.l.b16 %v93
    %v200 = vunpack.c.h.b16 %v93
    %v201 = vunpack.c.l.b16 %v94
    %v202 = vunpack.c.h.b16 %v94
    %v203 = vunpack.c.l.b16 %v95
    %v204 = vunpack.c.h.b16 %v95
    %v205 = vunpack.c.l.b16 %v96
    %v206 = vunpack.c.h.b16 %v96
    %v207 = vunpack.c.l.b16 %v97
    %v208 = vunpack.c.h.b16 %v97
    %v209 = vunpack.c.l.b16 %v98
    %v210 = vunpack.c.h.b16 %v98
    %v211 = vunpack.c.l.b16 %v99
    %v212 = vunpack.c.h.b16 %v99
    %v213 = vunpack.c.l.b16 %v100
    %v214 = vunpack.c.h.b16 %v100
    %v215 = vunpack.c.l.b16 %v101
    %v216 = vunpack.c.h.b16 %v101
    %v217 = vunpack.c.l.b16 %v102
    %v218 = vunpack.c.h.b16 %v102
    %v219 = vunpack.c.l.b16 %v103
    %v220 = vunpack.c.h.b16 %v103
    %v221 = vunpack.c.l.b16 %v104
    %v222 = vunpack.c.h.b16 %v104
    %v223 = vunpack.c.l.b16 %v105
    %v224 = vunpack.c.h.b16 %v105
    %v225 = vunpack.c.l.b16 %v106
    %v226 = vunpack.c.h.b16 %v106
    %v227 = vunpack.c.l.b16 %v107
    %v228 = vunpack.c.h.b16 %v107
    %v229 = vunpack.c.l.b16 %v108
    %v230 = vunpack.c.h.b16 %v108
    %v231 = vunpack.c.l.b16 %v109
    %v232 = vunpack.c.h.b16 %v109
    %v233 = vunpack.c.l.b16 %v110
    %v234 = vunpack.c.h.b16 %v110
    %v235 = vunpack.c.l.b16 %v111
    %v236 = vunpack.c.h.b16 %v111
    %v237 = vunpack.c.l.b16 %v112
    %v238 = vunpack.c.h.b16 %v112
    %v239 = vunpack.c.l.b16 %v113
    %v240 = vunpack.c.h.b16 %v113
    %v241 = vunpack.c.l.b16 %v114
    %v242 = vunpack.c.h.b16 %v114
    %v243 = vpack.c.b16 %v181, %v179
    %v244 = vpack.c.b16 %v182, %v180
    %v245 = vpack.c.b16 %v185, %v183
    %v246 = vpack.c.b16 %v186, %v184
    %v247 = vpack.c.b16 %v189, %v187
    %v248 = vpack.c.b16 %v190, %v188
    %v249 = vpack.c.b16 %v193, %v191
    %v250 = vpack.c.b16 %v194, %v192
    %v251 = vpack.c.b16 %v197, %v195
    %v252 = vpack.c.b16 %v198, %v196
    %v253 = vpack.c.b16 %v201, %v199
    %v254 = vpack.c.b16 %v202, %v200
    %v255 = vpack.c.b16 %v205, %v203
    %v256 = vpack.c.b16 %v206, %v204
    %v257 = vpack.c.b16 %v209, %v207
    %v258 = vpack.c.b16 %v210, %v208
    %v259 = vpack.c.b16 %v213, %v211
    %v260 = vpack.c.b16 %v214, %v212
    %v261 = vpack.c.b16 %v217, %v215
    %v262 = vpack.c.b16 %v218, %v216
    %v263 = vpack.c.b16 %v221, %v219
    %v264 = vpack.c.b16 %v222, %v220
    %v265 = vpack.c.b16 %v225, %v223
    %v266 = vpack.c.b16 %v226, %v224
    %v267 = vpack.c.b16 %v229, %v227
    %v268 = vpack.c.b16 %v230, %v228
    %v269 = vpack.c.b16 %v233, %v231
    %v270 = vpack.c.b16 %v234, %v232
    %v271 = vpack.c.b16 %v237, %v235
    %v272 = vpack.c.b16 %v238, %v236
    %v273 = vpack.c.b16 %v241, %v239
    %v274 = vpack.c.b16 %v242, %v240
    %v339 = vunpack.c.l.b16 %v115
    %v340 = vunpack.c.l.b16 %v116
    %v341 = vunpack.c.l.b16 %v117
    %v342 = vunpack.c.l.b16 %v118
    %v343 = vunpack.c.l.b16 %v119
    %v344 = vunpack.c.l.b16 %v120
    %v345 = vunpack.c.l.b16 %v121
    %v346 = vunpack.c.l.b16 %v122
    %v347 = vunpack.c.l.b16 %v123
    %v348 = vunpack.c.l.b16 %v124
    %v349 = vunpack.c.l.b16 %v125
    %v350 = vunpack.c.l.b16 %v126
    %v351 = vunpack.c.l.b16 %v127
    %v352 = vunpack.c.l.b16 %v128
    %v353 = vunpack.c.l.b16 %v129
    %v354 = vunpack.c.l.b16 %v130
    %v355 = vunpack.c.l.b16 %v131
    %v356 = vunpack.c.l.b16 %v132
    %v357 = vunpack.c.l.b16 %v133
    %v358 = vunpack.c.l.b16 %v134
    %v359 = vunpack.c.l.b16 %v135
    %v360 = vunpack.c.l.b16 %v136
    %v361 = vunpack.c.l.b16 %v137
    %v362 = vunpack.c.l.b16 %v138
    %v363 = vunpack.c.l.b16 %v139
    %v364 = vunpack.c.l.b16 %v140
    %v365 = vunpack.c.l.b16 %v141
    %v366 = vunpack.c.l.b16 %v142
    %v367 = vunpack.c.l.b16 %v143
    %v368 = vunpack.c.l.b16 %v144
    %v369 = vunpack.c.l.b16 %v145
    %v370 = vunpack.c.l.b16 %v146
    %v371 = vpack.c.b16 %v340, %v339
    %v372 = vpack.c.b16 %v342, %v341
    %v373 = vpack.c.b16 %v344, %v343
    %v374 = vpack.c.b16 %v346, %v345
    %v375 = vpack.c.b16 %v348, %v347
    %v376 = vpack.c.b16 %v350, %v349
    %v377 = vpack.c.b16 %v352, %v351
    %v378 = vpack.c.b16 %v354, %v353
    %v379 = vpack.c.b16 %v356, %v355
    %v380 = vpack.c.b16 %v358, %v357
    %v381 = vpack.c.b16 %v360, %v359
    %v382 = vpack.c.b16 %v362, %v361
    %v383 = vpack.c.b16 %v364, %v363
    %v384 = vpack.c.b16 %v366, %v365
    %v385 = vpack.c.b16 %v368, %v367
    %v386 = vpack.c.b16 %v370, %v369
    %403 = vmatprep.subr.bf16.mxu0 0
    %404 = vmatpush1.bf16.msra.mxu0 %v371
    %405 = vmatprep.subr.bf16.mxu0 0
    %406 = vmatpush1.bf16.msra.mxu0 %v372
    %407 = vmatprep.subr.bf16.mxu0 0
    %408 = vmatpush1.bf16.msra.mxu0 %v373
    %409 = vmatprep.subr.bf16.mxu0 0
    %410 = vmatpush1.bf16.msra.mxu0 %v374
    %411 = vmatprep.subr.bf16.mxu0 0
    %412 = vmatpush1.bf16.msra.mxu0 %v375
    %413 = vmatprep.subr.bf16.mxu0 0
    %414 = vmatpush1.bf16.msra.mxu0 %v376
    %415 = vmatprep.subr.bf16.mxu0 0
    %416 = vmatpush1.bf16.msra.mxu0 %v377
    %417 = vmatprep.subr.bf16.mxu0 0
    %418 = vmatpush1.bf16.msra.mxu0 %v378
    %419 = vmatprep.subr.bf16.mxu0 0
    %420 = vmatpush1.bf16.msra.mxu0 %v379
    %421 = vmatprep.subr.bf16.mxu0 0
    %422 = vmatpush1.bf16.msra.mxu0 %v380
    %423 = vmatprep.subr.bf16.mxu0 0
    %424 = vmatpush1.bf16.msra.mxu0 %v381
    %425 = vmatprep.subr.bf16.mxu0 0
    %426 = vmatpush1.bf16.msra.mxu0 %v382
    %427 = vmatprep.subr.bf16.mxu0 0
    %428 = vmatpush1.bf16.msra.mxu0 %v383
    %429 = vmatprep.subr.bf16.mxu0 0
    %430 = vmatpush1.bf16.msra.mxu0 %v384
    %431 = vmatprep.subr.bf16.mxu0 0
    %432 = vmatpush1.bf16.msra.mxu0 %v385
    %433 = vmatprep.subr.bf16.mxu0 0
    %434 = vmatpush1.bf16.msra.mxu0 %v386
    %435 = vmatprep.mubr.bf16.mxu0 %v244
    %436 = vmatmul.mubr.bf16.gmra.mrb[0].mxu0 %v243
    %v437 = vpop.f32.mrb[0].mxu0
    %v438 = vadd.f32 0.0, %v437
    %v439 = vpop.f32.mrb[0].mxu0
    %v440 = vpop.f32.mrb[0].mxu0
    %v441 = vadd.f32 0.0, %v440
    %v442 = vpop.f32.mrb[0].mxu0
    %443 = vmatprep.mubr.bf16.mxu0 %v246
    %444 = vmatmul.mubr.bf16.gmra.mrb[0].mxu0 %v245
    %v445 = vpop.f32.mrb[0].mxu0
    %v446 = vadd.f32 0.0, %v445
    %v447 = vpop.f32.mrb[0].mxu0
    %v448 = vpop.f32.mrb[0].mxu0
    %v449 = vadd.f32 0.0, %v448
    %v450 = vpop.f32.mrb[0].mxu0
    %451 = vmatprep.mubr.bf16.mxu0 %v248
    %452 = vmatmul.mubr.bf16.gmra.mrb[0].mxu0 %v247
    %v453 = vpop.f32.mrb[0].mxu0
    %v454 = vadd.f32 0.0, %v453
    %v455 = vpop.f32.mrb[0].mxu0
    %v456 = vpop.f32.mrb[0].mxu0
    %v457 = vadd.f32 0.0, %v456
    %v458 = vpop.f32.mrb[0].mxu0
    %459 = vmatprep.mubr.bf16.mxu0 %v250
    %460 = vmatmul.mubr.bf16.gmra.mrb[0].mxu0 %v249
    %v461 = vpop.f32.mrb[0].mxu0
    %v462 = vadd.f32 0.0, %v461
    %v463 = vpop.f32.mrb[0].mxu0
    %v464 = vpop.f32.mrb[0].mxu0
    %v465 = vadd.f32 0.0, %v464
    %v466 = vpop.f32.mrb[0].mxu0
    %467 = vmatprep.mubr.bf16.mxu0 %v252
    %468 = vmatmul.mubr.bf16.gmra.mrb[0].mxu0 %v251
    %v469 = vpop.f32.mrb[0].mxu0
    %v470 = vadd.f32 0.0, %v469
    %v471 = vpop.f32.mrb[0].mxu0
    %v472 = vpop.f32.mrb[0].mxu0
    %v473 = vadd.f32 0.0, %v472
    %v474 = vpop.f32.mrb[0].mxu0
    %475 = vmatprep.mubr.bf16.mxu0 %v254
    %476 = vmatmul.mubr.bf16.gmra.mrb[0].mxu0 %v253
    %v477 = vpop.f32.mrb[0].mxu0
    %v478 = vadd.f32 0.0, %v477
    %v479 = vpop.f32.mrb[0].mxu0
    %v480 = vpop.f32.mrb[0].mxu0
    %v481 = vadd.f32 0.0, %v480
    %v482 = vpop.f32.mrb[0].mxu0
    %483 = vmatprep.mubr.bf16.mxu0 %v256
    %484 = vmatmul.mubr.bf16.gmra.mrb[0].mxu0 %v255
    %v485 = vpop.f32.mrb[0].mxu0
    %v486 = vadd.f32 0.0, %v485
    %v487 = vpop.f32.mrb[0].mxu0
    %v488 = vpop.f32.mrb[0].mxu0
    %v489 = vadd.f32 0.0, %v488
    %v490 = vpop.f32.mrb[0].mxu0
    %491 = vmatprep.mubr.bf16.mxu0 %v258
    %492 = vmatmul.mubr.bf16.gmra.mrb[0].mxu0 %v257
    %v493 = vpop.f32.mrb[0].mxu0
    %v494 = vadd.f32 0.0, %v493
    %v495 = vpop.f32.mrb[0].mxu0
    %v496 = vpop.f32.mrb[0].mxu0
    %v497 = vadd.f32 0.0, %v496
    %v498 = vpop.f32.mrb[0].mxu0
    %499 = vmatprep.mubr.bf16.mxu0 %v260
    %500 = vmatmul.mubr.bf16.gmra.mrb[0].mxu0 %v259
    %v501 = vpop.f32.mrb[0].mxu0
    %v502 = vadd.f32 0.0, %v501
    %v503 = vpop.f32.mrb[0].mxu0
    %v504 = vpop.f32.mrb[0].mxu0
    %v505 = vadd.f32 0.0, %v504
    %v506 = vpop.f32.mrb[0].mxu0
    %507 = vmatprep.mubr.bf16.mxu0 %v262
    %508 = vmatmul.mubr.bf16.gmra.mrb[0].mxu0 %v261
    %v509 = vpop.f32.mrb[0].mxu0
    %v510 = vadd.f32 0.0, %v509
    %v511 = vpop.f32.mrb[0].mxu0
    %v512 = vpop.f32.mrb[0].mxu0
    %v513 = vadd.f32 0.0, %v512
    %v514 = vpop.f32.mrb[0].mxu0
    %515 = vmatprep.mubr.bf16.mxu0 %v264
    %516 = vmatmul.mubr.bf16.gmra.mrb[0].mxu0 %v263
    %v517 = vpop.f32.mrb[0].mxu0
    %v518 = vadd.f32 0.0, %v517
    %v519 = vpop.f32.mrb[0].mxu0
    %v520 = vpop.f32.mrb[0].mxu0
    %v521 = vadd.f32 0.0, %v520
    %v522 = vpop.f32.mrb[0].mxu0
    %523 = vmatprep.mubr.bf16.mxu0 %v266
    %524 = vmatmul.mubr.bf16.gmra.mrb[0].mxu0 %v265
    %v525 = vpop.f32.mrb[0].mxu0
    %v526 = vadd.f32 0.0, %v525
    %v527 = vpop.f32.mrb[0].mxu0
    %v528 = vpop.f32.mrb[0].mxu0
    %v529 = vadd.f32 0.0, %v528
    %v530 = vpop.f32.mrb[0].mxu0
    %531 = vmatprep.mubr.bf16.mxu0 %v268
    %532 = vmatmul.mubr.bf16.gmra.mrb[0].mxu0 %v267
    %v533 = vpop.f32.mrb[0].mxu0
    %v534 = vadd.f32 0.0, %v533
    %v535 = vpop.f32.mrb[0].mxu0
    %v536 = vpop.f32.mrb[0].mxu0
    %v537 = vadd.f32 0.0, %v536
    %v538 = vpop.f32.mrb[0].mxu0
    %539 = vmatprep.mubr.bf16.mxu0 %v270
    %540 = vmatmul.mubr.bf16.gmra.mrb[0].mxu0 %v269
    %v541 = vpop.f32.mrb[0].mxu0
    %v542 = vadd.f32 0.0, %v541
    %v543 = vpop.f32.mrb[0].mxu0
    %v544 = vpop.f32.mrb[0].mxu0
    %v545 = vadd.f32 0.0, %v544
    %v546 = vpop.f32.mrb[0].mxu0
    %547 = vmatprep.mubr.bf16.mxu0 %v272
    %548 = vmatmul.mubr.bf16.gmra.mrb[0].mxu0 %v271
    %v549 = vpop.f32.mrb[0].mxu0
    %v550 = vadd.f32 0.0, %v549
    %v551 = vpop.f32.mrb[0].mxu0
    %v552 = vpop.f32.mrb[0].mxu0
    %v553 = vadd.f32 0.0, %v552
    %v554 = vpop.f32.mrb[0].mxu0
    %555 = vmatprep.mubr.bf16.mxu0 %v274
    %556 = vmatmul.mubr.bf16.gmra.mrb[0].mxu0 %v273
    %v557 = vpop.f32.mrb[0].mxu0
    %v558 = vadd.f32 0.0, %v557
    %v559 = vpop.f32.mrb[0].mxu0
    %v560 = vpop.f32.mrb[0].mxu0
    %v561 = vadd.f32 0.0, %v560
    %v562 = vpop.f32.mrb[0].mxu0
    %563 = vdwg.mxu0
    %v564 = vpack.c.bf16 %v441, %v438
    %v565 = vpack.c.bf16 %v449, %v446
    %v566 = vpack.c.bf16 %v457, %v454
    %v567 = vpack.c.bf16 %v465, %v462
    %v568 = vpack.c.bf16 %v473, %v470
    %v569 = vpack.c.bf16 %v481, %v478
    %v570 = vpack.c.bf16 %v489, %v486
    %v571 = vpack.c.bf16 %v497, %v494
    %v572 = vpack.c.bf16 %v505, %v502
    %v573 = vpack.c.bf16 %v513, %v510
    %v574 = vpack.c.bf16 %v521, %v518
    %v575 = vpack.c.bf16 %v529, %v526
    %v576 = vpack.c.bf16 %v537, %v534
    %v577 = vpack.c.bf16 %v545, %v542
    %v578 = vpack.c.bf16 %v553, %v550
    %v579 = vpack.c.bf16 %v561, %v558
    %v580 = vld [vmem:[#allocation8] sm:$0xf]
    %v581 = vld [vmem:[#allocation8 + $0x4] sm:$0xf]
    %v582 = vld [vmem:[#allocation8 + $0x8] sm:$0xf]
    %v583 = vld [vmem:[#allocation8 + $0xc] sm:$0xf]
    %v584 = vld [vmem:[#allocation8 + $0x10] sm:$0xf]
    %v585 = vld [vmem:[#allocation8 + $0x14] sm:$0xf]
    %v586 = vld [vmem:[#allocation8 + $0x18] sm:$0xf]
    %v587 = vld [vmem:[#allocation8 + $0x1c] sm:$0xf]
    %v588 = vld [vmem:[#allocation8 + $0x20] sm:$0xf]
    %v589 = vld [vmem:[#allocation8 + $0x24] sm:$0xf]
    %v590 = vld [vmem:[#allocation8 + $0x28] sm:$0xf]
    %v591 = vld [vmem:[#allocation8 + $0x2c] sm:$0xf]
    %v592 = vld [vmem:[#allocation8 + $0x30] sm:$0xf]
    %v593 = vld [vmem:[#allocation8 + $0x34] sm:$0xf]
    %v594 = vld [vmem:[#allocation8 + $0x38] sm:$0xf]
    %v595 = vld [vmem:[#allocation8 + $0x3c] sm:$0xf]
    %v596 = vld [vmem:[%s3] sm:$0x1]
    %v598 = vlaneseq
    %v599 = vshrl.u32 %v598, 7
    %v600 = vsub.s32 0, %v599
    %v601 = vrot.slane %v596, %v600
    %v619 = vunpack.c.l.b16 %v580
    %v620 = vunpack.c.l.b16 %v581
    %v621 = vunpack.c.l.b16 %v582
    %v622 = vunpack.c.l.b16 %v583
    %v623 = vunpack.c.l.b16 %v584
    %v624 = vunpack.c.l.b16 %v585
    %v625 = vunpack.c.l.b16 %v586
    %v626 = vunpack.c.l.b16 %v587
    %v627 = vunpack.c.l.b16 %v588
    %v628 = vunpack.c.l.b16 %v589
    %v629 = vunpack.c.l.b16 %v590
    %v630 = vunpack.c.l.b16 %v591
    %v631 = vunpack.c.l.b16 %v592
    %v632 = vunpack.c.l.b16 %v593
    %v633 = vunpack.c.l.b16 %v594
    %v634 = vunpack.c.l.b16 %v595
    %v635 = vpack.c.b16 %v620, %v619
    %v636 = vpack.c.b16 %v622, %v621
    %v637 = vpack.c.b16 %v624, %v623
    %v638 = vpack.c.b16 %v626, %v625
    %v639 = vpack.c.b16 %v628, %v627
    %v640 = vpack.c.b16 %v630, %v629
    %v641 = vpack.c.b16 %v632, %v631
    %v642 = vpack.c.b16 %v634, %v633
    %651 = vmatprep.subr.bf16.mxu0 0
    %652 = vmatpush1.bf16.msra.mxu0 %v635
    %653 = vmatprep.subr.bf16.mxu0 0
    %654 = vmatpush1.bf16.msra.mxu0 %v636
    %655 = vmatprep.subr.bf16.mxu0 0
    %656 = vmatpush1.bf16.msra.mxu0 %v637
    %657 = vmatprep.subr.bf16.mxu0 0
    %658 = vmatpush1.bf16.msra.mxu0 %v638
    %659 = vmatprep.subr.bf16.mxu0 0
    %660 = vmatpush1.bf16.msra.mxu0 %v639
    %661 = vmatprep.subr.bf16.mxu0 0
    %662 = vmatpush1.bf16.msra.mxu0 %v640
    %663 = vmatprep.subr.bf16.mxu0 0
    %664 = vmatpush1.bf16.msra.mxu0 %v641
    %665 = vmatprep.subr.bf16.mxu0 0
    %666 = vmatpush1.bf16.msra.mxu0 %v642
    %667 = vmatprep.subr.bf16.mxu0 0
    %668 = vmatpush1.bf16.msra.mxu0 0
    %669 = vmatprep.subr.bf16.mxu0 0
    %670 = vmatpush1.bf16.msra.mxu0 0
    %671 = vmatprep.subr.bf16.mxu0 0
    %672 = vmatpush1.bf16.msra.mxu0 0
    %673 = vmatprep.subr.bf16.mxu0 0
    %674 = vmatpush1.bf16.msra.mxu0 0
    %675 = vmatprep.subr.bf16.mxu0 0
    %676 = vmatpush1.bf16.msra.mxu0 0
    %677 = vmatprep.subr.bf16.mxu0 0
    %678 = vmatpush1.bf16.msra.mxu0 0
    %679 = vmatprep.subr.bf16.mxu0 0
    %680 = vmatpush1.bf16.msra.mxu0 0
    %681 = vmatprep.subr.bf16.mxu0 0
    %682 = vmatpush1.bf16.msra.mxu0 0
    %683 = vmatprep.mubr.bf16.mxu0 0
    %684 = vmatmul.mubr.bf16.gmra.mrb[0].mxu0 %v564
    %v685 = vpop.f32.mrb[0].mxu0
    %v686 = vadd.f32 %v601, %v685
    %v687 = vpop.f32.mrb[0].mxu0
    %v688 = vpop.f32.mrb[0].mxu0
    %v689 = vadd.f32 %v601, %v688
    %v690 = vpop.f32.mrb[0].mxu0
    %691 = vmatprep.mubr.bf16.mxu0 0
    %692 = vmatmul.mubr.bf16.gmra.mrb[0].mxu0 %v565
    %v693 = vpop.f32.mrb[0].mxu0
    %v694 = vadd.f32 %v601, %v693
    %v695 = vpop.f32.mrb[0].mxu0
    %v696 = vpop.f32.mrb[0].mxu0
    %v697 = vadd.f32 %v601, %v696
    %v698 = vpop.f32.mrb[0].mxu0
    %699 = vmatprep.mubr.bf16.mxu0 0
    %700 = vmatmul.mubr.bf16.gmra.mrb[0].mxu0 %v566
    %v701 = vpop.f32.mrb[0].mxu0
    %v702 = vadd.f32 %v601, %v701
    %v703 = vpop.f32.mrb[0].mxu0
    %v704 = vpop.f32.mrb[0].mxu0
    %v705 = vadd.f32 %v601, %v704
    %v706 = vpop.f32.mrb[0].mxu0
    %707 = vmatprep.mubr.bf16.mxu0 0
    %708 = vmatmul.mubr.bf16.gmra.mrb[0].mxu0 %v567
    %v709 = vpop.f32.mrb[0].mxu0
    %v710 = vadd.f32 %v601, %v709
    %v711 = vpop.f32.mrb[0].mxu0
    %v712 = vpop.f32.mrb[0].mxu0
    %v713 = vadd.f32 %v601, %v712
    %v714 = vpop.f32.mrb[0].mxu0
    %715 = vmatprep.mubr.bf16.mxu0 0
    %716 = vmatmul.mubr.bf16.gmra.mrb[0].mxu0 %v568
    %v717 = vpop.f32.mrb[0].mxu0
    %v718 = vadd.f32 %v601, %v717
    %v719 = vpop.f32.mrb[0].mxu0
    %v720 = vpop.f32.mrb[0].mxu0
    %v721 = vadd.f32 %v601, %v720
    %v722 = vpop.f32.mrb[0].mxu0
    %723 = vmatprep.mubr.bf16.mxu0 0
    %724 = vmatmul.mubr.bf16.gmra.mrb[0].mxu0 %v569
    %v725 = vpop.f32.mrb[0].mxu0
    %v726 = vadd.f32 %v601, %v725
    %v727 = vpop.f32.mrb[0].mxu0
    %v728 = vpop.f32.mrb[0].mxu0
    %v729 = vadd.f32 %v601, %v728
    %v730 = vpop.f32.mrb[0].mxu0
    %731 = vmatprep.mubr.bf16.mxu0 0
    %732 = vmatmul.mubr.bf16.gmra.mrb[0].mxu0 %v570
    %v733 = vpop.f32.mrb[0].mxu0
    %v734 = vadd.f32 %v601, %v733
    %v735 = vpop.f32.mrb[0].mxu0
    %v736 = vpop.f32.mrb[0].mxu0
    %v737 = vadd.f32 %v601, %v736
    %v738 = vpop.f32.mrb[0].mxu0
    %739 = vmatprep.mubr.bf16.mxu0 0
    %740 = vmatmul.mubr.bf16.gmra.mrb[0].mxu0 %v571
    %v741 = vpop.f32.mrb[0].mxu0
    %v742 = vadd.f32 %v601, %v741
    %v743 = vpop.f32.mrb[0].mxu0
    %v744 = vpop.f32.mrb[0].mxu0
    %v745 = vadd.f32 %v601, %v744
    %v746 = vpop.f32.mrb[0].mxu0
    %747 = vmatprep.mubr.bf16.mxu0 0
    %748 = vmatmul.mubr.bf16.gmra.mrb[0].mxu0 %v572
    %v749 = vpop.f32.mrb[0].mxu0
    %v750 = vadd.f32 %v601, %v749
    %v751 = vpop.f32.mrb[0].mxu0
    %v752 = vpop.f32.mrb[0].mxu0
    %v753 = vadd.f32 %v601, %v752
    %v754 = vpop.f32.mrb[0].mxu0
    %755 = vmatprep.mubr.bf16.mxu0 0
    %756 = vmatmul.mubr.bf16.gmra.mrb[0].mxu0 %v573
    %v757 = vpop.f32.mrb[0].mxu0
    %v758 = vadd.f32 %v601, %v757
    %v759 = vpop.f32.mrb[0].mxu0
    %v760 = vpop.f32.mrb[0].mxu0
    %v761 = vadd.f32 %v601, %v760
    %v762 = vpop.f32.mrb[0].mxu0
    %763 = vmatprep.mubr.bf16.mxu0 0
    %764 = vmatmul.mubr.bf16.gmra.mrb[0].mxu0 %v574
    %v765 = vpop.f32.mrb[0].mxu0
    %v766 = vadd.f32 %v601, %v765
    %v767 = vpop.f32.mrb[0].mxu0
    %v768 = vpop.f32.mrb[0].mxu0
    %v769 = vadd.f32 %v601, %v768
    %v770 = vpop.f32.mrb[0].mxu0
    %771 = vmatprep.mubr.bf16.mxu0 0
    %772 = vmatmul.mubr.bf16.gmra.mrb[0].mxu0 %v575
    %v773 = vpop.f32.mrb[0].mxu0
    %v774 = vadd.f32 %v601, %v773
    %v775 = vpop.f32.mrb[0].mxu0
    %v776 = vpop.f32.mrb[0].mxu0
    %v777 = vadd.f32 %v601, %v776
    %v778 = vpop.f32.mrb[0].mxu0
    %779 = vmatprep.mubr.bf16.mxu0 0
    %780 = vmatmul.mubr.bf16.gmra.mrb[0].mxu0 %v576
    %v781 = vpop.f32.mrb[0].mxu0
    %v782 = vadd.f32 %v601, %v781
    %v783 = vpop.f32.mrb[0].mxu0
    %v784 = vpop.f32.mrb[0].mxu0
    %v785 = vadd.f32 %v601, %v784
    %v786 = vpop.f32.mrb[0].mxu0
    %787 = vmatprep.mubr.bf16.mxu0 0
    %788 = vmatmul.mubr.bf16.gmra.mrb[0].mxu0 %v577
    %v789 = vpop.f32.mrb[0].mxu0
    %v790 = vadd.f32 %v601, %v789
    %v791 = vpop.f32.mrb[0].mxu0
    %v792 = vpop.f32.mrb[0].mxu0
    %v793 = vadd.f32 %v601, %v792
    %v794 = vpop.f32.mrb[0].mxu0
    %795 = vmatprep.mubr.bf16.mxu0 0
    %796 = vmatmul.mubr.bf16.gmra.mrb[0].mxu0 %v578
    %v797 = vpop.f32.mrb[0].mxu0
    %v798 = vadd.f32 %v601, %v797
    %v799 = vpop.f32.mrb[0].mxu0
    %v800 = vpop.f32.mrb[0].mxu0
    %v801 = vadd.f32 %v601, %v800
    %v802 = vpop.f32.mrb[0].mxu0
    %803 = vmatprep.mubr.bf16.mxu0 0
    %804 = vmatmul.mubr.bf16.gmra.mrb[0].mxu0 %v579
    %v805 = vpop.f32.mrb[0].mxu0
    %v806 = vadd.f32 %v601, %v805
    %v807 = vpop.f32.mrb[0].mxu0
    %v808 = vpop.f32.mrb[0].mxu0
    %v809 = vadd.f32 %v601, %v808
    %v810 = vpop.f32.mrb[0].mxu0
    %811 = vdwg.mxu0
    %v812 = vmax.f32 %v686, 0.0
    %v813 = vmax.f32 %v689, 0.0
    %v814 = vmax.f32 %v694, 0.0
    %v815 = vmax.f32 %v697, 0.0
    %v816 = vmax.f32 %v702, 0.0
    %v817 = vmax.f32 %v705, 0.0
    %v818 = vmax.f32 %v710, 0.0
    %v819 = vmax.f32 %v713, 0.0
    %v820 = vmax.f32 %v718, 0.0
    %v821 = vmax.f32 %v721, 0.0
    %v822 = vmax.f32 %v726, 0.0
    %v823 = vmax.f32 %v729, 0.0
    %v824 = vmax.f32 %v734, 0.0
    %v825 = vmax.f32 %v737, 0.0
    %v826 = vmax.f32 %v742, 0.0
    %v827 = vmax.f32 %v745, 0.0
    %v828 = vmax.f32 %v750, 0.0
    %v829 = vmax.f32 %v753, 0.0
    %v830 = vmax.f32 %v758, 0.0
    %v831 = vmax.f32 %v761, 0.0
    %v832 = vmax.f32 %v766, 0.0
    %v833 = vmax.f32 %v769, 0.0
    %v834 = vmax.f32 %v774, 0.0
    %v835 = vmax.f32 %v777, 0.0
    %v836 = vmax.f32 %v782, 0.0
    %v837 = vmax.f32 %v785, 0.0
    %v838 = vmax.f32 %v790, 0.0
    %v839 = vmax.f32 %v793, 0.0
    %v840 = vmax.f32 %v798, 0.0
    %v841 = vmax.f32 %v801, 0.0
    %v842 = vmax.f32 %v806, 0.0
    %v843 = vmax.f32 %v809, 0.0
    %v844 = vpack.c.bf16 %v813, %v812
    %v845 = vpack.c.bf16 %v815, %v814
    %v846 = vpack.c.bf16 %v817, %v816
    %v847 = vpack.c.bf16 %v819, %v818
    %v848 = vpack.c.bf16 %v821, %v820
    %v849 = vpack.c.bf16 %v823, %v822
    %v850 = vpack.c.bf16 %v825, %v824
    %v851 = vpack.c.bf16 %v827, %v826
    %v852 = vpack.c.bf16 %v829, %v828
    %v853 = vpack.c.bf16 %v831, %v830
    %v854 = vpack.c.bf16 %v833, %v832
    %v855 = vpack.c.bf16 %v835, %v834
    %v856 = vpack.c.bf16 %v837, %v836
    %v857 = vpack.c.bf16 %v839, %v838
    %v858 = vpack.c.bf16 %v841, %v840
    %v859 = vpack.c.bf16 %v843, %v842
    %860 = vst [vmem:[#allocation2] sm:$0xff] %v844
    %861 = vst [vmem:[#allocation2 + $0x8] sm:$0xff] %v845
    %862 = vst [vmem:[#allocation2 + $0x10] sm:$0xff] %v846
    %863 = vst [vmem:[#allocation2 + $0x18] sm:$0xff] %v847
    %864 = vst [vmem:[#allocation2 + $0x20] sm:$0xff] %v848
    %865 = vst [vmem:[#allocation2 + $0x28] sm:$0xff] %v849
    %866 = vst [vmem:[#allocation2 + $0x30] sm:$0xff] %v850
    %867 = vst [vmem:[#allocation2 + $0x38] sm:$0xff] %v851
    %868 = vst [vmem:[#allocation2 + $0x40] sm:$0xff] %v852
    %869 = vst [vmem:[#allocation2 + $0x48] sm:$0xff] %v853
    %870 = vst [vmem:[#allocation2 + $0x50] sm:$0xff] %v854
    %871 = vst [vmem:[#allocation2 + $0x58] sm:$0xff] %v855
    %872 = vst [vmem:[#allocation2 + $0x60] sm:$0xff] %v856
    %873 = vst [vmem:[#allocation2 + $0x68] sm:$0xff] %v857
    %874 = vst [vmem:[#allocation2 + $0x70] sm:$0xff] %v858
    %875 = vst [vmem:[#allocation2 + $0x78] sm:$0xff] %v859
    %v876 = vld [vmem:[%s82] sm:$0xff]
    %v877 = vld [vmem:[%s82 + $0x8] sm:$0xff]
    %v878 = vld [vmem:[%s82 + $0x10] sm:$0xff]
    %v879 = vld [vmem:[%s82 + $0x18] sm:$0xff]
    %v880 = vld [vmem:[%s82 + $0x20] sm:$0xff]
    %v881 = vld [vmem:[%s82 + $0x28] sm:$0xff]
    %v882 = vld [vmem:[%s82 + $0x30] sm:$0xff]
    %v883 = vld [vmem:[%s82 + $0x38] sm:$0xff]
    %v884 = vld [vmem:[%s82 + $0x40] sm:$0xff]
    %v885 = vld [vmem:[%s82 + $0x48] sm:$0xff]
    %v886 = vld [vmem:[%s82 + $0x50] sm:$0xff]
    %v887 = vld [vmem:[%s82 + $0x58] sm:$0xff]
    %v888 = vld [vmem:[%s82 + $0x60] sm:$0xff]
    %v889 = vld [vmem:[%s82 + $0x68] sm:$0xff]
    %v890 = vld [vmem:[%s82 + $0x70] sm:$0xff]
    %v891 = vld [vmem:[%s82 + $0x78] sm:$0xff]
    %v892 = vld [vmem:[%s82 + $0x80] sm:$0xff]
    %v893 = vld [vmem:[%s82 + $0x88] sm:$0xff]
    %v894 = vld [vmem:[%s82 + $0x90] sm:$0xff]
    %v895 = vld [vmem:[%s82 + $0x98] sm:$0xff]
    %v896 = vld [vmem:[%s82 + $0xa0] sm:$0xff]
    %v897 = vld [vmem:[%s82 + $0xa8] sm:$0xff]
    %v898 = vld [vmem:[%s82 + $0xb0] sm:$0xff]
    %v899 = vld [vmem:[%s82 + $0xb8] sm:$0xff]
    %v900 = vld [vmem:[%s82 + $0xc0] sm:$0xff]
    %v901 = vld [vmem:[%s82 + $0xc8] sm:$0xff]
    %v902 = vld [vmem:[%s82 + $0xd0] sm:$0xff]
    %v903 = vld [vmem:[%s82 + $0xd8] sm:$0xff]
    %v904 = vld [vmem:[%s82 + $0xe0] sm:$0xff]
    %v905 = vld [vmem:[%s82 + $0xe8] sm:$0xff]
    %v906 = vld [vmem:[%s82 + $0xf0] sm:$0xff]
    %v907 = vld [vmem:[%s82 + $0xf8] sm:$0xff]
    %v908 = vld [vmem:[#allocation2] sm:$0xff]
    %v909 = vld [vmem:[#allocation2 + $0x8] sm:$0xff]
    %v910 = vld [vmem:[#allocation2 + $0x10] sm:$0xff]
    %v911 = vld [vmem:[#allocation2 + $0x18] sm:$0xff]
    %v912 = vld [vmem:[#allocation2 + $0x20] sm:$0xff]
    %v913 = vld [vmem:[#allocation2 + $0x28] sm:$0xff]
    %v914 = vld [vmem:[#allocation2 + $0x30] sm:$0xff]
    %v915 = vld [vmem:[#allocation2 + $0x38] sm:$0xff]
    %v916 = vld [vmem:[#allocation2 + $0x40] sm:$0xff]
    %v917 = vld [vmem:[#allocation2 + $0x48] sm:$0xff]
    %v918 = vld [vmem:[#allocation2 + $0x50] sm:$0xff]
    %v919 = vld [vmem:[#allocation2 + $0x58] sm:$0xff]
    %v920 = vld [vmem:[#allocation2 + $0x60] sm:$0xff]
    %v921 = vld [vmem:[#allocation2 + $0x68] sm:$0xff]
    %v922 = vld [vmem:[#allocation2 + $0x70] sm:$0xff]
    %v923 = vld [vmem:[#allocation2 + $0x78] sm:$0xff]
    %v956 = vunpack.c.l.b16 %v876
    %v957 = vunpack.c.h.b16 %v876
    %v958 = vunpack.c.l.b16 %v877
    %v959 = vunpack.c.h.b16 %v877
    %v960 = vunpack.c.l.b16 %v878
    %v961 = vunpack.c.h.b16 %v878
    %v962 = vunpack.c.l.b16 %v879
    %v963 = vunpack.c.h.b16 %v879
    %v964 = vunpack.c.l.b16 %v880
    %v965 = vunpack.c.h.b16 %v880
    %v966 = vunpack.c.l.b16 %v881
    %v967 = vunpack.c.h.b16 %v881
    %v968 = vunpack.c.l.b16 %v882
    %v969 = vunpack.c.h.b16 %v882
    %v970 = vunpack.c.l.b16 %v883
    %v971 = vunpack.c.h.b16 %v883
    %v972 = vunpack.c.l.b16 %v884
    %v973 = vunpack.c.h.b16 %v884
    %v974 = vunpack.c.l.b16 %v885
    %v975 = vunpack.c.h.b16 %v885
    %v976 = vunpack.c.l.b16 %v886
    %v977 = vunpack.c.h.b16 %v886
    %v978 = vunpack.c.l.b16 %v887
    %v979 = vunpack.c.h.b16 %v887
    %v980 = vunpack.c.l.b16 %v888
    %v981 = vunpack.c.h.b16 %v888
    %v982 = vunpack.c.l.b16 %v889
    %v983 = vunpack.c.h.b16 %v889
    %v984 = vunpack.c.l.b16 %v890
    %v985 = vunpack.c.h.b16 %v890
    %v986 = vunpack.c.l.b16 %v891
    %v987 = vunpack.c.h.b16 %v891
    %v988 = vunpack.c.l.b16 %v892
    %v989 = vunpack.c.h.b16 %v892
    %v990 = vunpack.c.l.b16 %v893
    %v991 = vunpack.c.h.b16 %v893
    %v992 = vunpack.c.l.b16 %v894
    %v993 = vunpack.c.h.b16 %v894
    %v994 = vunpack.c.l.b16 %v895
    %v995 = vunpack.c.h.b16 %v895
    %v996 = vunpack.c.l.b16 %v896
    %v997 = vunpack.c.h.b16 %v896
    %v998 = vunpack.c.l.b16 %v897
    %v999 = vunpack.c.h.b16 %v897
    %v1000 = vunpack.c.l.b16 %v898
    %v1001 = vunpack.c.h.b16 %v898
    %v1002 = vunpack.c.l.b16 %v899
    %v1003 = vunpack.c.h.b16 %v899
    %v1004 = vunpack.c.l.b16 %v900
    %v1005 = vunpack.c.h.b16 %v900
    %v1006 = vunpack.c.l.b16 %v901
    %v1007 = vunpack.c.h.b16 %v901
    %v1008 = vunpack.c.l.b16 %v902
    %v1009 = vunpack.c.h.b16 %v902
    %v1010 = vunpack.c.l.b16 %v903
    %v1011 = vunpack.c.h.b16 %v903
    %v1012 = vunpack.c.l.b16 %v904
    %v1013 = vunpack.c.h.b16 %v904
    %v1014 = vunpack.c.l.b16 %v905
    %v1015 = vunpack.c.h.b16 %v905
    %v1016 = vunpack.c.l.b16 %v906
    %v1017 = vunpack.c.h.b16 %v906
    %v1018 = vunpack.c.l.b16 %v907
    %v1019 = vunpack.c.h.b16 %v907
    %v1020 = vpack.c.b16 %v958, %v956
    %v1021 = vpack.c.b16 %v959, %v957
    %v1022 = vpack.c.b16 %v962, %v960
    %v1023 = vpack.c.b16 %v963, %v961
    %v1024 = vpack.c.b16 %v966, %v964
    %v1025 = vpack.c.b16 %v967, %v965
    %v1026 = vpack.c.b16 %v970, %v968
    %v1027 = vpack.c.b16 %v971, %v969
    %v1028 = vpack.c.b16 %v974, %v972
    %v1029 = vpack.c.b16 %v975, %v973
    %v1030 = vpack.c.b16 %v978, %v976
    %v1031 = vpack.c.b16 %v979, %v977
    %v1032 = vpack.c.b16 %v982, %v980
    %v1033 = vpack.c.b16 %v983, %v981
    %v1034 = vpack.c.b16 %v986, %v984
    %v1035 = vpack.c.b16 %v987, %v985
    %v1036 = vpack.c.b16 %v990, %v988
    %v1037 = vpack.c.b16 %v991, %v989
    %v1038 = vpack.c.b16 %v994, %v992
    %v1039 = vpack.c.b16 %v995, %v993
    %v1040 = vpack.c.b16 %v998, %v996
    %v1041 = vpack.c.b16 %v999, %v997
    %v1042 = vpack.c.b16 %v1002, %v1000
    %v1043 = vpack.c.b16 %v1003, %v1001
    %v1044 = vpack.c.b16 %v1006, %v1004
    %v1045 = vpack.c.b16 %v1007, %v1005
    %v1046 = vpack.c.b16 %v1010, %v1008
    %v1047 = vpack.c.b16 %v1011, %v1009
    %v1048 = vpack.c.b16 %v1014, %v1012
    %v1049 = vpack.c.b16 %v1015, %v1013
    %v1050 = vpack.c.b16 %v1018, %v1016
    %v1051 = vpack.c.b16 %v1019, %v1017
    %1084 = vmatprep.subr.bf16.mxu0 0
    %1085 = vmatpush1.bf16.msra.mxu0 %v908
    %1086 = vmatprep.subr.bf16.mxu0 0
    %1087 = vmatpush1.bf16.msra.mxu0 %v909
    %1088 = vmatprep.subr.bf16.mxu0 0
    %1089 = vmatpush1.bf16.msra.mxu0 %v910
    %1090 = vmatprep.subr.bf16.mxu0 0
    %1091 = vmatpush1.bf16.msra.mxu0 %v911
    %1092 = vmatprep.subr.bf16.mxu0 0
    %1093 = vmatpush1.bf16.msra.mxu0 %v912
    %1094 = vmatprep.subr.bf16.mxu0 0
    %1095 = vmatpush1.bf16.msra.mxu0 %v913
    %1096 = vmatprep.subr.bf16.mxu0 0
    %1097 = vmatpush1.bf16.msra.mxu0 %v914
    %1098 = vmatprep.subr.bf16.mxu0 0
    %1099 = vmatpush1.bf16.msra.mxu0 %v915
    %1100 = vmatprep.subr.bf16.mxu0 0
    %1101 = vmatpush1.bf16.msra.mxu0 %v916
    %1102 = vmatprep.subr.bf16.mxu0 0
    %1103 = vmatpush1.bf16.msra.mxu0 %v917
    %1104 = vmatprep.subr.bf16.mxu0 0
    %1105 = vmatpush1.bf16.msra.mxu0 %v918
    %1106 = vmatprep.subr.bf16.mxu0 0
    %1107 = vmatpush1.bf16.msra.mxu0 %v919
    %1108 = vmatprep.subr.bf16.mxu0 0
    %1109 = vmatpush1.bf16.msra.mxu0 %v920
    %1110 = vmatprep.subr.bf16.mxu0 0
    %1111 = vmatpush1.bf16.msra.mxu0 %v921
    %1112 = vmatprep.subr.bf16.mxu0 0
    %1113 = vmatpush1.bf16.msra.mxu0 %v922
    %1114 = vmatprep.subr.bf16.mxu0 0
    %1115 = vmatpush1.bf16.msra.mxu0 %v923
    %1116 = vmatprep.mubr.bf16.mxu0 %v1021
    %1117 = vmatmul.mubr.bf16.gmra.mrb[0].mxu0 %v1020
    %v1118 = vpop.f32.mrb[0].mxu0
    %v1119 = vadd.f32 0.0, %v1118
    %v1120 = vpop.f32.mrb[0].mxu0
    %v1121 = vpop.f32.mrb[0].mxu0
    %v1122 = vadd.f32 0.0, %v1121
    %v1123 = vpop.f32.mrb[0].mxu0
    %1124 = vmatprep.mubr.bf16.mxu0 %v1023
    %1125 = vmatmul.mubr.bf16.gmra.mrb[0].mxu0 %v1022
    %v1126 = vpop.f32.mrb[0].mxu0
    %v1127 = vadd.f32 0.0, %v1126
    %v1128 = vpop.f32.mrb[0].mxu0
    %v1129 = vpop.f32.mrb[0].mxu0
    %v1130 = vadd.f32 0.0, %v1129
    %v1131 = vpop.f32.mrb[0].mxu0
    %1132 = vmatprep.mubr.bf16.mxu0 %v1025
    %1133 = vmatmul.mubr.bf16.gmra.mrb[0].mxu0 %v1024
    %v1134 = vpop.f32.mrb[0].mxu0
    %v1135 = vadd.f32 0.0, %v1134
    %v1136 = vpop.f32.mrb[0].mxu0
    %v1137 = vpop.f32.mrb[0].mxu0
    %v1138 = vadd.f32 0.0, %v1137
    %v1139 = vpop.f32.mrb[0].mxu0
    %1140 = vmatprep.mubr.bf16.mxu0 %v1027
    %1141 = vmatmul.mubr.bf16.gmra.mrb[0].mxu0 %v1026
    %v1142 = vpop.f32.mrb[0].mxu0
    %v1143 = vadd.f32 0.0, %v1142
    %v1144 = vpop.f32.mrb[0].mxu0
    %v1145 = vpop.f32.mrb[0].mxu0
    %v1146 = vadd.f32 0.0, %v1145
    %v1147 = vpop.f32.mrb[0].mxu0
    %1148 = vmatprep.mubr.bf16.mxu0 %v1029
    %1149 = vmatmul.mubr.bf16.gmra.mrb[0].mxu0 %v1028
    %v1150 = vpop.f32.mrb[0].mxu0
    %v1151 = vadd.f32 0.0, %v1150
    %v1152 = vpop.f32.mrb[0].mxu0
    %v1153 = vpop.f32.mrb[0].mxu0
    %v1154 = vadd.f32 0.0, %v1153
    %v1155 = vpop.f32.mrb[0].mxu0
    %1156 = vmatprep.mubr.bf16.mxu0 %v1031
    %1157 = vmatmul.mubr.bf16.gmra.mrb[0].mxu0 %v1030
    %v1158 = vpop.f32.mrb[0].mxu0
    %v1159 = vadd.f32 0.0, %v1158
    %v1160 = vpop.f32.mrb[0].mxu0
    %v1161 = vpop.f32.mrb[0].mxu0
    %v1162 = vadd.f32 0.0, %v1161
    %v1163 = vpop.f32.mrb[0].mxu0
    %1164 = vmatprep.mubr.bf16.mxu0 %v1033
    %1165 = vmatmul.mubr.bf16.gmra.mrb[0].mxu0 %v1032
    %v1166 = vpop.f32.mrb[0].mxu0
    %v1167 = vadd.f32 0.0, %v1166
    %v1168 = vpop.f32.mrb[0].mxu0
    %v1169 = vpop.f32.mrb[0].mxu0
    %v1170 = vadd.f32 0.0, %v1169
    %v1171 = vpop.f32.mrb[0].mxu0
    %1172 = vmatprep.mubr.bf16.mxu0 %v1035
    %1173 = vmatmul.mubr.bf16.gmra.mrb[0].mxu0 %v1034
    %v1174 = vpop.f32.mrb[0].mxu0
    %v1175 = vadd.f32 0.0, %v1174
    %v1176 = vpop.f32.mrb[0].mxu0
    %v1177 = vpop.f32.mrb[0].mxu0
    %v1178 = vadd.f32 0.0, %v1177
    %v1179 = vpop.f32.mrb[0].mxu0
    %1180 = vmatprep.mubr.bf16.mxu0 %v1037
    %1181 = vmatmul.mubr.bf16.gmra.mrb[0].mxu0 %v1036
    %v1182 = vpop.f32.mrb[0].mxu0
    %v1183 = vadd.f32 0.0, %v1182
    %v1184 = vpop.f32.mrb[0].mxu0
    %v1185 = vpop.f32.mrb[0].mxu0
    %v1186 = vadd.f32 0.0, %v1185
    %v1187 = vpop.f32.mrb[0].mxu0
    %1188 = vmatprep.mubr.bf16.mxu0 %v1039
    %1189 = vmatmul.mubr.bf16.gmra.mrb[0].mxu0 %v1038
    %v1190 = vpop.f32.mrb[0].mxu0
    %v1191 = vadd.f32 0.0, %v1190
    %v1192 = vpop.f32.mrb[0].mxu0
    %v1193 = vpop.f32.mrb[0].mxu0
    %v1194 = vadd.f32 0.0, %v1193
    %v1195 = vpop.f32.mrb[0].mxu0
    %1196 = vmatprep.mubr.bf16.mxu0 %v1041
    %1197 = vmatmul.mubr.bf16.gmra.mrb[0].mxu0 %v1040
    %v1198 = vpop.f32.mrb[0].mxu0
    %v1199 = vadd.f32 0.0, %v1198
    %v1200 = vpop.f32.mrb[0].mxu0
    %v1201 = vpop.f32.mrb[0].mxu0
    %v1202 = vadd.f32 0.0, %v1201
    %v1203 = vpop.f32.mrb[0].mxu0
    %1204 = vmatprep.mubr.bf16.mxu0 %v1043
    %1205 = vmatmul.mubr.bf16.gmra.mrb[0].mxu0 %v1042
    %v1206 = vpop.f32.mrb[0].mxu0
    %v1207 = vadd.f32 0.0, %v1206
    %v1208 = vpop.f32.mrb[0].mxu0
    %v1209 = vpop.f32.mrb[0].mxu0
    %v1210 = vadd.f32 0.0, %v1209
    %v1211 = vpop.f32.mrb[0].mxu0
    %1212 = vmatprep.mubr.bf16.mxu0 %v1045
    %1213 = vmatmul.mubr.bf16.gmra.mrb[0].mxu0 %v1044
    %v1214 = vpop.f32.mrb[0].mxu0
    %v1215 = vadd.f32 0.0, %v1214
    %v1216 = vpop.f32.mrb[0].mxu0
    %v1217 = vpop.f32.mrb[0].mxu0
    %v1218 = vadd.f32 0.0, %v1217
    %v1219 = vpop.f32.mrb[0].mxu0
    %1220 = vmatprep.mubr.bf16.mxu0 %v1047
    %1221 = vmatmul.mubr.bf16.gmra.mrb[0].mxu0 %v1046
    %v1222 = vpop.f32.mrb[0].mxu0
    %v1223 = vadd.f32 0.0, %v1222
    %v1224 = vpop.f32.mrb[0].mxu0
    %v1225 = vpop.f32.mrb[0].mxu0
    %v1226 = vadd.f32 0.0, %v1225
    %v1227 = vpop.f32.mrb[0].mxu0
    %1228 = vmatprep.mubr.bf16.mxu0 %v1049
    %1229 = vmatmul.mubr.bf16.gmra.mrb[0].mxu0 %v1048
    %v1230 = vpop.f32.mrb[0].mxu0
    %v1231 = vadd.f32 0.0, %v1230
    %v1232 = vpop.f32.mrb[0].mxu0
    %v1233 = vpop.f32.mrb[0].mxu0
    %v1234 = vadd.f32 0.0, %v1233
    %v1235 = vpop.f32.mrb[0].mxu0
    %1236 = vmatprep.mubr.bf16.mxu0 %v1051
    %1237 = vmatmul.mubr.bf16.gmra.mrb[0].mxu0 %v1050
    %v1238 = vpop.f32.mrb[0].mxu0
    %v1239 = vadd.f32 0.0, %v1238
    %v1240 = vpop.f32.mrb[0].mxu0
    %v1241 = vpop.f32.mrb[0].mxu0
    %v1242 = vadd.f32 0.0, %v1241
    %v1243 = vpop.f32.mrb[0].mxu0
    %1244 = vdwg.mxu0
    %v1245 = vpack.c.bf16 %v1122, %v1119
    %v1246 = vpack.c.bf16 %v1130, %v1127
    %v1247 = vpack.c.bf16 %v1138, %v1135
    %v1248 = vpack.c.bf16 %v1146, %v1143
    %v1249 = vpack.c.bf16 %v1154, %v1151
    %v1250 = vpack.c.bf16 %v1162, %v1159
    %v1251 = vpack.c.bf16 %v1170, %v1167
    %v1252 = vpack.c.bf16 %v1178, %v1175
    %v1253 = vpack.c.bf16 %v1186, %v1183
    %v1254 = vpack.c.bf16 %v1194, %v1191
    %v1255 = vpack.c.bf16 %v1202, %v1199
    %v1256 = vpack.c.bf16 %v1210, %v1207
    %v1257 = vpack.c.bf16 %v1218, %v1215
    %v1258 = vpack.c.bf16 %v1226, %v1223
    %v1259 = vpack.c.bf16 %v1234, %v1231
    %v1260 = vpack.c.bf16 %v1242, %v1239
    %v1261 = vld [vmem:[#allocation9] sm:$0xf]
    %v1262 = vld [vmem:[#allocation9 + $0x4] sm:$0xf]
    %v1263 = vld [vmem:[#allocation9 + $0x8] sm:$0xf]
    %v1264 = vld [vmem:[#allocation9 + $0xc] sm:$0xf]
    %v1265 = vld [vmem:[#allocation9 + $0x10] sm:$0xf]
    %v1266 = vld [vmem:[#allocation9 + $0x14] sm:$0xf]
    %v1267 = vld [vmem:[#allocation9 + $0x18] sm:$0xf]
    %v1268 = vld [vmem:[#allocation9 + $0x1c] sm:$0xf]
    %v1269 = vld [vmem:[#allocation9 + $0x20] sm:$0xf]
    %v1270 = vld [vmem:[#allocation9 + $0x24] sm:$0xf]
    %v1271 = vld [vmem:[#allocation9 + $0x28] sm:$0xf]
    %v1272 = vld [vmem:[#allocation9 + $0x2c] sm:$0xf]
    %v1273 = vld [vmem:[#allocation9 + $0x30] sm:$0xf]
    %v1274 = vld [vmem:[#allocation9 + $0x34] sm:$0xf]
    %v1275 = vld [vmem:[#allocation9 + $0x38] sm:$0xf]
    %v1276 = vld [vmem:[#allocation9 + $0x3c] sm:$0xf]
    %v1277 = vld [vmem:[%s5] sm:$0x1]
    %v1279 = vlaneseq
    %v1280 = vshrl.u32 %v1279, 7
    %v1281 = vsub.s32 0, %v1280
    %v1282 = vrot.slane %v1277, %v1281
    %v1300 = vunpack.c.l.b16 %v1261
    %v1301 = vunpack.c.l.b16 %v1262
    %v1302 = vunpack.c.l.b16 %v1263
    %v1303 = vunpack.c.l.b16 %v1264
    %v1304 = vunpack.c.l.b16 %v1265
    %v1305 = vunpack.c.l.b16 %v1266
    %v1306 = vunpack.c.l.b16 %v1267
    %v1307 = vunpack.c.l.b16 %v1268
    %v1308 = vunpack.c.l.b16 %v1269
    %v1309 = vunpack.c.l.b16 %v1270
    %v1310 = vunpack.c.l.b16 %v1271
    %v1311 = vunpack.c.l.b16 %v1272
    %v1312 = vunpack.c.l.b16 %v1273
    %v1313 = vunpack.c.l.b16 %v1274
    %v1314 = vunpack.c.l.b16 %v1275
    %v1315 = vunpack.c.l.b16 %v1276
    %v1316 = vpack.c.b16 %v1301, %v1300
    %v1317 = vpack.c.b16 %v1303, %v1302
    %v1318 = vpack.c.b16 %v1305, %v1304
    %v1319 = vpack.c.b16 %v1307, %v1306
    %v1320 = vpack.c.b16 %v1309, %v1308
    %v1321 = vpack.c.b16 %v1311, %v1310
    %v1322 = vpack.c.b16 %v1313, %v1312
    %v1323 = vpack.c.b16 %v1315, %v1314
    %1332 = vmatprep.subr.bf16.mxu0 0
    %1333 = vmatpush1.bf16.msra.mxu0 %v1316
    %1334 = vmatprep.subr.bf16.mxu0 0
    %1335 = vmatpush1.bf16.msra.mxu0 %v1317
    %1336 = vmatprep.subr.bf16.mxu0 0
    %1337 = vmatpush1.bf16.msra.mxu0 %v1318
    %1338 = vmatprep.subr.bf16.mxu0 0
    %1339 = vmatpush1.bf16.msra.mxu0 %v1319
    %1340 = vmatprep.subr.bf16.mxu0 0
    %1341 = vmatpush1.bf16.msra.mxu0 %v1320
    %1342 = vmatprep.subr.bf16.mxu0 0
    %1343 = vmatpush1.bf16.msra.mxu0 %v1321
    %1344 = vmatprep.subr.bf16.mxu0 0
    %1345 = vmatpush1.bf16.msra.mxu0 %v1322
    %1346 = vmatprep.subr.bf16.mxu0 0
    %1347 = vmatpush1.bf16.msra.mxu0 %v1323
    %1348 = vmatprep.subr.bf16.mxu0 0
    %1349 = vmatpush1.bf16.msra.mxu0 0
    %1350 = vmatprep.subr.bf16.mxu0 0
    %1351 = vmatpush1.bf16.msra.mxu0 0
    %1352 = vmatprep.subr.bf16.mxu0 0
    %1353 = vmatpush1.bf16.msra.mxu0 0
    %1354 = vmatprep.subr.bf16.mxu0 0
    %1355 = vmatpush1.bf16.msra.mxu0 0
    %1356 = vmatprep.subr.bf16.mxu0 0
    %1357 = vmatpush1.bf16.msra.mxu0 0
    %1358 = vmatprep.subr.bf16.mxu0 0
    %1359 = vmatpush1.bf16.msra.mxu0 0
    %1360 = vmatprep.subr.bf16.mxu0 0
    %1361 = vmatpush1.bf16.msra.mxu0 0
    %1362 = vmatprep.subr.bf16.mxu0 0
    %1363 = vmatpush1.bf16.msra.mxu0 0
    %1364 = vmatprep.mubr.bf16.mxu0 0
    %1365 = vmatmul.mubr.bf16.gmra.mrb[0].mxu0 %v1245
    %v1366 = vpop.f32.mrb[0].mxu0
    %v1367 = vadd.f32 %v1282, %v1366
    %v1368 = vpop.f32.mrb[0].mxu0
    %v1369 = vpop.f32.mrb[0].mxu0
    %v1370 = vadd.f32 %v1282, %v1369
    %v1371 = vpop.f32.mrb[0].mxu0
    %1372 = vmatprep.mubr.bf16.mxu0 0
    %1373 = vmatmul.mubr.bf16.gmra.mrb[0].mxu0 %v1246
    %v1374 = vpop.f32.mrb[0].mxu0
    %v1375 = vadd.f32 %v1282, %v1374
    %v1376 = vpop.f32.mrb[0].mxu0
    %v1377 = vpop.f32.mrb[0].mxu0
    %v1378 = vadd.f32 %v1282, %v1377
    %v1379 = vpop.f32.mrb[0].mxu0
    %1380 = vmatprep.mubr.bf16.mxu0 0
    %1381 = vmatmul.mubr.bf16.gmra.mrb[0].mxu0 %v1247
    %v1382 = vpop.f32.mrb[0].mxu0
    %v1383 = vadd.f32 %v1282, %v1382
    %v1384 = vpop.f32.mrb[0].mxu0
    %v1385 = vpop.f32.mrb[0].mxu0
    %v1386 = vadd.f32 %v1282, %v1385
    %v1387 = vpop.f32.mrb[0].mxu0
    %1388 = vmatprep.mubr.bf16.mxu0 0
    %1389 = vmatmul.mubr.bf16.gmra.mrb[0].mxu0 %v1248
    %v1390 = vpop.f32.mrb[0].mxu0
    %v1391 = vadd.f32 %v1282, %v1390
    %v1392 = vpop.f32.mrb[0].mxu0
    %v1393 = vpop.f32.mrb[0].mxu0
    %v1394 = vadd.f32 %v1282, %v1393
    %v1395 = vpop.f32.mrb[0].mxu0
    %1396 = vmatprep.mubr.bf16.mxu0 0
    %1397 = vmatmul.mubr.bf16.gmra.mrb[0].mxu0 %v1249
    %v1398 = vpop.f32.mrb[0].mxu0
    %v1399 = vadd.f32 %v1282, %v1398
    %v1400 = vpop.f32.mrb[0].mxu0
    %v1401 = vpop.f32.mrb[0].mxu0
    %v1402 = vadd.f32 %v1282, %v1401
    %v1403 = vpop.f32.mrb[0].mxu0
    %1404 = vmatprep.mubr.bf16.mxu0 0
    %1405 = vmatmul.mubr.bf16.gmra.mrb[0].mxu0 %v1250
    %v1406 = vpop.f32.mrb[0].mxu0
    %v1407 = vadd.f32 %v1282, %v1406
    %v1408 = vpop.f32.mrb[0].mxu0
    %v1409 = vpop.f32.mrb[0].mxu0
    %v1410 = vadd.f32 %v1282, %v1409
    %v1411 = vpop.f32.mrb[0].mxu0
    %1412 = vmatprep.mubr.bf16.mxu0 0
    %1413 = vmatmul.mubr.bf16.gmra.mrb[0].mxu0 %v1251
    %v1414 = vpop.f32.mrb[0].mxu0
    %v1415 = vadd.f32 %v1282, %v1414
    %v1416 = vpop.f32.mrb[0].mxu0
    %v1417 = vpop.f32.mrb[0].mxu0
    %v1418 = vadd.f32 %v1282, %v1417
    %v1419 = vpop.f32.mrb[0].mxu0
    %1420 = vmatprep.mubr.bf16.mxu0 0
    %1421 = vmatmul.mubr.bf16.gmra.mrb[0].mxu0 %v1252
    %v1422 = vpop.f32.mrb[0].mxu0
    %v1423 = vadd.f32 %v1282, %v1422
    %v1424 = vpop.f32.mrb[0].mxu0
    %v1425 = vpop.f32.mrb[0].mxu0
    %v1426 = vadd.f32 %v1282, %v1425
    %v1427 = vpop.f32.mrb[0].mxu0
    %1428 = vmatprep.mubr.bf16.mxu0 0
    %1429 = vmatmul.mubr.bf16.gmra.mrb[0].mxu0 %v1253
    %v1430 = vpop.f32.mrb[0].mxu0
    %v1431 = vadd.f32 %v1282, %v1430
    %v1432 = vpop.f32.mrb[0].mxu0
    %v1433 = vpop.f32.mrb[0].mxu0
    %v1434 = vadd.f32 %v1282, %v1433
    %v1435 = vpop.f32.mrb[0].mxu0
    %1436 = vmatprep.mubr.bf16.mxu0 0
    %1437 = vmatmul.mubr.bf16.gmra.mrb[0].mxu0 %v1254
    %v1438 = vpop.f32.mrb[0].mxu0
    %v1439 = vadd.f32 %v1282, %v1438
    %v1440 = vpop.f32.mrb[0].mxu0
    %v1441 = vpop.f32.mrb[0].mxu0
    %v1442 = vadd.f32 %v1282, %v1441
    %v1443 = vpop.f32.mrb[0].mxu0
    %1444 = vmatprep.mubr.bf16.mxu0 0
    %1445 = vmatmul.mubr.bf16.gmra.mrb[0].mxu0 %v1255
    %v1446 = vpop.f32.mrb[0].mxu0
    %v1447 = vadd.f32 %v1282, %v1446
    %v1448 = vpop.f32.mrb[0].mxu0
    %v1449 = vpop.f32.mrb[0].mxu0
    %v1450 = vadd.f32 %v1282, %v1449
    %v1451 = vpop.f32.mrb[0].mxu0
    %1452 = vmatprep.mubr.bf16.mxu0 0
    %1453 = vmatmul.mubr.bf16.gmra.mrb[0].mxu0 %v1256
    %v1454 = vpop.f32.mrb[0].mxu0
    %v1455 = vadd.f32 %v1282, %v1454
    %v1456 = vpop.f32.mrb[0].mxu0
    %v1457 = vpop.f32.mrb[0].mxu0
    %v1458 = vadd.f32 %v1282, %v1457
    %v1459 = vpop.f32.mrb[0].mxu0
    %1460 = vmatprep.mubr.bf16.mxu0 0
    %1461 = vmatmul.mubr.bf16.gmra.mrb[0].mxu0 %v1257
    %v1462 = vpop.f32.mrb[0].mxu0
    %v1463 = vadd.f32 %v1282, %v1462
    %v1464 = vpop.f32.mrb[0].mxu0
    %v1465 = vpop.f32.mrb[0].mxu0
    %v1466 = vadd.f32 %v1282, %v1465
    %v1467 = vpop.f32.mrb[0].mxu0
    %1468 = vmatprep.mubr.bf16.mxu0 0
    %1469 = vmatmul.mubr.bf16.gmra.mrb[0].mxu0 %v1258
    %v1470 = vpop.f32.mrb[0].mxu0
    %v1471 = vadd.f32 %v1282, %v1470
    %v1472 = vpop.f32.mrb[0].mxu0
    %v1473 = vpop.f32.mrb[0].mxu0
    %v1474 = vadd.f32 %v1282, %v1473
    %v1475 = vpop.f32.mrb[0].mxu0
    %1476 = vmatprep.mubr.bf16.mxu0 0
    %1477 = vmatmul.mubr.bf16.gmra.mrb[0].mxu0 %v1259
    %v1478 = vpop.f32.mrb[0].mxu0
    %v1479 = vadd.f32 %v1282, %v1478
    %v1480 = vpop.f32.mrb[0].mxu0
    %v1481 = vpop.f32.mrb[0].mxu0
    %v1482 = vadd.f32 %v1282, %v1481
    %v1483 = vpop.f32.mrb[0].mxu0
    %1484 = vmatprep.mubr.bf16.mxu0 0
    %1485 = vmatmul.mubr.bf16.gmra.mrb[0].mxu0 %v1260
    %v1486 = vpop.f32.mrb[0].mxu0
    %v1487 = vadd.f32 %v1282, %v1486
    %v1488 = vpop.f32.mrb[0].mxu0
    %v1489 = vpop.f32.mrb[0].mxu0
    %v1490 = vadd.f32 %v1282, %v1489
    %v1491 = vpop.f32.mrb[0].mxu0
    %1492 = vdwg.mxu0
    %1493 = vst [vmem:[#allocation11] sm:$0xff] %v1367
    %1494 = vst [vmem:[#allocation11 + $0x8] sm:$0xff] %v1370
    %1495 = vst [vmem:[#allocation11 + $0x10] sm:$0xff] %v1375
    %1496 = vst [vmem:[#allocation11 + $0x18] sm:$0xff] %v1378
    %1497 = vst [vmem:[#allocation11 + $0x20] sm:$0xff] %v1383
    %1498 = vst [vmem:[#allocation11 + $0x28] sm:$0xff] %v1386
    %1499 = vst [vmem:[#allocation11 + $0x30] sm:$0xff] %v1391
    %1500 = vst [vmem:[#allocation11 + $0x38] sm:$0xff] %v1394
    %1501 = vst [vmem:[#allocation11 + $0x40] sm:$0xff] %v1399
    %1502 = vst [vmem:[#allocation11 + $0x48] sm:$0xff] %v1402
    %1503 = vst [vmem:[#allocation11 + $0x50] sm:$0xff] %v1407
    %1504 = vst [vmem:[#allocation11 + $0x58] sm:$0xff] %v1410
    %1505 = vst [vmem:[#allocation11 + $0x60] sm:$0xff] %v1415
    %1506 = vst [vmem:[#allocation11 + $0x68] sm:$0xff] %v1418
    %1507 = vst [vmem:[#allocation11 + $0x70] sm:$0xff] %v1423
    %1508 = vst [vmem:[#allocation11 + $0x78] sm:$0xff] %v1426
    %1509 = vst [vmem:[#allocation11 + $0x80] sm:$0xff] %v1431
    %1510 = vst [vmem:[#allocation11 + $0x88] sm:$0xff] %v1434
    %1511 = vst [vmem:[#allocation11 + $0x90] sm:$0xff] %v1439
    %1512 = vst [vmem:[#allocation11 + $0x98] sm:$0xff] %v1442
    %1513 = vst [vmem:[#allocation11 + $0xa0] sm:$0xff] %v1447
    %1514 = vst [vmem:[#allocation11 + $0xa8] sm:$0xff] %v1450
    %1515 = vst [vmem:[#allocation11 + $0xb0] sm:$0xff] %v1455
    %1516 = vst [vmem:[#allocation11 + $0xb8] sm:$0xff] %v1458
    %1517 = vst [vmem:[#allocation11 + $0xc0] sm:$0xff] %v1463
    %1518 = vst [vmem:[#allocation11 + $0xc8] sm:$0xff] %v1466
    %1519 = vst [vmem:[#allocation11 + $0xd0] sm:$0xff] %v1471
    %1520 = vst [vmem:[#allocation11 + $0xd8] sm:$0xff] %v1474
    %1521 = vst [vmem:[#allocation11 + $0xe0] sm:$0xff] %v1479
    %1522 = vst [vmem:[#allocation11 + $0xe8] sm:$0xff] %v1482
    %1523 = vst [vmem:[#allocation11 + $0xf0] sm:$0xff] %v1487
    %1524 = vst [vmem:[#allocation11 + $0xf8] sm:$0xff] %v1490
    // Predicated region
    $region42: #{tpu_custom_call.1} parent=1 // pred_check
      _
    $region43: #{tpu_custom_call.1} parent=1 // pred_check_branch
      %1526 = sbr.rel (0) target = $region45
    $region44: #{tpu_custom_call.1} parent=1 // pred_region
      %s1528 = ssub.s32 4096, 4096
      %1529 = vsyncadd [#allocation5], %s1528
      %s1530 = sshll.u32 [#allocation11], 4
      %s1531 = int_to_ptr.vmem [resolvable:$true] %s1530
      %1536 = dma.vmem_to_hbm [thread:$0]  %s1531, 4096, %s6, [#allocation5], 128, 128, 8
    $region45: #{tpu_custom_call.1} parent=1 // pred_fallthru
      _
    // Predicated region
    $region46: #{tpu_custom_call.1} parent=1 // pred_check
      _
    $region47: #{tpu_custom_call.1} parent=1 // pred_check_branch
      %1538 = sbr.rel (0) target = $region49
    $region48: #{tpu_custom_call.1} parent=1 // pred_region
      %1539 = dma.done [#allocation5], 4096
    $region49: #{tpu_custom_call.1} parent=1 // pred_fallthru
      _
    %1540 = vsyncpa [#allocation4], 1
    %1541 = vsyncpa [#allocation7], 1
    %1542 = vsyncpa [#allocation10], 1
    %1543 = vsyncpa [#allocation5], 1

</llo_original>
